<compile_context>
chip_gen: v6e
topology: v6e:2x2x1
jax: 0.10.0
libtpu: 0.0.40
codegen_flags: <defaults>
</compile_context>

<pallas_src>
import jax
import jax.numpy as jnp
from jax.experimental import pallas as pl
from jax.experimental.pallas import tpu as pltpu

OBS_DIM = 7
LATENT_DIM = 5
IN_DIM = OBS_DIM + LATENT_DIM      # 12
IN_PAD = 16                        # padded contraction dim for fc1
HIDDEN = 512
OUT_DIM = 4
OUT_PAD = 128                      # lane-dense output tile
BN_EPS = 1e-5
TB_MAX = 512                       # max rows per grid step


def _generator_kernel(x_ref,
                      w1_ref, b1_ref,
                      w2_ref, b2_ref,
                      w3_ref, b3_ref,
                      w4_ref, b4_ref,
                      wy_ref, by_ref,
                      o_ref):
    """One row-block of the residual MLP.

    Weights/activations feeding the MXU are bf16; accumulation and the
    residual stream are f32.  BatchNorm scales are pre-folded into w2/w3/w4;
    the default-stat pre-ReLU shift is zero and specialized away.
    """
    x = x_ref[...]                                                    # bf16 (tb, 16)
    y1 = jnp.dot(x, w1_ref[...], preferred_element_type=jnp.float32) + b1_ref[...]

    h2 = jnp.maximum(y1, 0.0).astype(jnp.bfloat16)
    y2 = jnp.dot(h2, w2_ref[...], preferred_element_type=jnp.float32) + b2_ref[...] + y1

    h3 = jnp.maximum(y2, 0.0).astype(jnp.bfloat16)
    y3 = jnp.dot(h3, w3_ref[...], preferred_element_type=jnp.float32) + b3_ref[...] + y2

    h4 = jnp.maximum(y3, 0.0).astype(jnp.bfloat16)
    y4 = jnp.dot(h4, w4_ref[...], preferred_element_type=jnp.float32) + b4_ref[...] + y3

    y = jnp.dot(y4.astype(jnp.bfloat16), wy_ref[...],
                preferred_element_type=jnp.float32) + by_ref[...]
    o_ref[...] = jnp.tanh(y)


def init_params(key):
    """PyTorch-Linear-style uniform init, with padding / BN folding / bf16 cast."""
    def linear(k, fan_in, fan_out):
        k1, k2 = jax.random.split(k)
        bound = 1.0 / jnp.sqrt(jnp.float32(fan_in))
        w = jax.random.uniform(k1, (fan_in, fan_out), jnp.float32, -bound, bound)
        b = jax.random.uniform(k2, (1, fan_out), jnp.float32, -bound, bound)
        return w, b

    keys = jax.random.split(key, 5)
    w1, b1 = linear(keys[0], IN_DIM, HIDDEN)
    w2, b2 = linear(keys[1], HIDDEN, HIDDEN)
    w3, b3 = linear(keys[2], HIDDEN, HIDDEN)
    w4, b4 = linear(keys[3], HIDDEN, HIDDEN)
    wy, by = linear(keys[4], HIDDEN, OUT_DIM)

    # BatchNorm1d, eval/running stats, default init: norm(x) = x / sqrt(1+eps).
    # relu(s*x) = s*relu(x) for s>0, so diag(s) folds into the next layer's
    # weight rows; the shift is exactly zero and has no in-kernel path.
    bn_scale = 1.0 / jnp.sqrt(1.0 + BN_EPS)

    # Pad first / last layers to kernel widths (padded rows/cols are zero).
    w1_pad = jnp.zeros((IN_PAD, HIDDEN), jnp.float32).at[:IN_DIM, :].set(w1)
    wy_pad = jnp.zeros((HIDDEN, OUT_PAD), jnp.float32).at[:, :OUT_DIM].set(wy)
    by_pad = jnp.zeros((1, OUT_PAD), jnp.float32).at[:, :OUT_DIM].set(by)

    bf16 = lambda w: w.astype(jnp.bfloat16)
    return dict(
        w1=bf16(w1_pad), b1=b1,
        w2=bf16(bn_scale * w2), b2=b2,
        w3=bf16(bn_scale * w3), b3=b3,
        w4=bf16(bn_scale * w4), b4=b4,
        wy=bf16(wy_pad), by=by_pad,
    )


def _cdiv(a, b):
    return (a + b - 1) // b


def _round_up(x, m):
    return (x + m - 1) // m * m


def _pick_blocks(b):
    """Row-block count / size: minimize padding, force >=2 steps for megacore."""
    nb = _cdiv(b, TB_MAX)
    if b > 8:
        nb = max(nb, 2)            # v7x: shard the "parallel" axis over both TCs
    tb = _round_up(_cdiv(b, nb), 8)
    return nb, tb, nb * tb


def _run_mlp(params, x_pad, tb):
    b_pad = x_pad.shape[0]
    nb = b_pad // tb

    def const(shape):   # weights/biases: same block every step -> DMA'd once per TC
        return pl.BlockSpec(shape, lambda i: (0, 0))

    grid_spec = pltpu.PrefetchScalarGridSpec(
        num_scalar_prefetch=0,
        grid=(nb,),
        in_specs=[
            pl.BlockSpec((tb, IN_PAD), lambda i: (i, 0)),        # x
            const((IN_PAD, HIDDEN)), const((1, HIDDEN)),          # w1, b1
            const((HIDDEN, HIDDEN)), const((1, HIDDEN)),          # w2, b2
            const((HIDDEN, HIDDEN)), const((1, HIDDEN)),          # w3, b3
            const((HIDDEN, HIDDEN)), const((1, HIDDEN)),          # w4, b4
            const((HIDDEN, OUT_PAD)), const((1, OUT_PAD)),        # wy, by
        ],
        out_specs=pl.BlockSpec((tb, OUT_PAD), lambda i: (i, 0)),
    )
    return pl.pallas_call(
        _generator_kernel,
        out_shape=jax.ShapeDtypeStruct((b_pad, OUT_PAD), jnp.float32),
        grid_spec=grid_spec,
        compiler_params=pltpu.CompilerParams(
            dimension_semantics=("parallel",)),
    )(x_pad,
      params["w1"], params["b1"],
      params["w2"], params["b2"],
      params["w3"], params["b3"],
      params["w4"], params["b4"],
      params["wy"], params["by"])


@jax.jit
def _forward(params, obj, z):
    b = obj.shape[0]
    x = jnp.concatenate([obj.astype(jnp.float32), z.astype(jnp.float32)],
                        axis=1).astype(jnp.bfloat16)                # (B, 12) bf16
    _, tb, b_pad = _pick_blocks(b)
    x_pad = jnp.zeros((b_pad, IN_PAD), jnp.bfloat16).at[:b, :IN_DIM].set(x)
    out_pad = _run_mlp(params, x_pad, tb)
    return out_pad[:b, :OUT_DIM]                                    # (B, 4) f32


def feasibility_generator(params, obj, key=None, z=None):
    """Mirrors FeasibilityGenerator.forward: obj (B, 7) -> tanh MLP output (B, 4).

    The latent z ~ N(0,1) drawn inside the PyTorch forward is drawn from `key`
    unless an explicit z is supplied.
    """
    if z is None:
        z = jax.random.normal(key, (obj.shape[0], LATENT_DIM), jnp.float32)
    return _forward(params, obj, z)


def _reference(params, obj, z):
    """Pure-JAX reference mirroring the kernel math (same bf16 casts)."""
    x = jnp.concatenate([obj.astype(jnp.float32), z.astype(jnp.float32)],
                        axis=1).astype(jnp.bfloat16)
    x = jnp.pad(x, ((0, 0), (0, IN_PAD - IN_DIM)))
    f32 = jnp.float32
    y1 = jnp.dot(x, params["w1"], preferred_element_type=f32) + params["b1"]
    h2 = jnp.maximum(y1, 0.0).astype(jnp.bfloat16)
    y2 = jnp.dot(h2, params["w2"], preferred_element_type=f32) + params["b2"] + y1
    h3 = jnp.maximum(y2, 0.0).astype(jnp.bfloat16)
    y3 = jnp.dot(h3, params["w3"], preferred_element_type=f32) + params["b3"] + y2
    h4 = jnp.maximum(y3, 0.0).astype(jnp.bfloat16)
    y4 = jnp.dot(h4, params["w4"], preferred_element_type=f32) + params["b4"] + y3
    y = jnp.dot(y4.astype(jnp.bfloat16), params["wy"],
                preferred_element_type=f32) + params["by"]
    return jnp.tanh(y)[:, :OUT_DIM]


if __name__ == "__main__":
    key = jax.random.PRNGKey(0)
    k_param, k_data = jax.random.split(key)

    params = init_params(k_param)

    # B=4 exercises the single-block path; B=12 exercises the 2-step
    # (megacore-shardable) path.
    for B in (4, 12):
        ko, kz = jax.random.split(jax.random.fold_in(k_data, B))
        obj = jax.random.normal(ko, (B, OBS_DIM), jnp.float32)
        z = jax.random.normal(kz, (B, LATENT_DIM), jnp.float32)

        y = jax.block_until_ready(feasibility_generator(params, obj, z=z))
        y_ref = _reference(params, obj, z)

        assert y.shape == (B, OUT_DIM) and y.dtype == jnp.float32
        assert bool(jnp.all(jnp.isfinite(y))) and bool(jnp.all(jnp.abs(y) <= 1.0))
        assert bool(jnp.max(jnp.abs(y - y_ref)) < 1e-2)

    print("KERNEL_OK")
</pallas_src>

<mosaic_0001>
module attributes {stable_mosaic.version = 11 : i64} {
  func.func @_generator_kernel(%arg0: i32, %arg1: memref<8x16xbf16, #tpu.memory_space<vmem>>, %arg2: memref<16x512xbf16, #tpu.memory_space<vmem>>, %arg3: memref<1x512xf32, #tpu.memory_space<vmem>>, %arg4: memref<512x512xbf16, #tpu.memory_space<vmem>>, %arg5: memref<1x512xf32, #tpu.memory_space<vmem>>, %arg6: memref<512x512xbf16, #tpu.memory_space<vmem>>, %arg7: memref<1x512xf32, #tpu.memory_space<vmem>>, %arg8: memref<512x512xbf16, #tpu.memory_space<vmem>>, %arg9: memref<1x512xf32, #tpu.memory_space<vmem>>, %arg10: memref<512x128xbf16, #tpu.memory_space<vmem>>, %arg11: memref<1x128xf32, #tpu.memory_space<vmem>>, %arg12: memref<8x128xf32, #tpu.memory_space<vmem>>) attributes {dimension_semantics = [#tpu.dimension_semantics<parallel>], iteration_bounds = array<i64: 1>, scalar_prefetch = 0 : i64, scratch_operands = 0 : i64, tpu.core_type = #tpu.core_type<tc>, window_params = [{transform_indices = @transform_0, window_bounds = array<i64: 8, 16>}, {pipeline_mode = #tpu.pipeline_mode<synchronous>, transform_indices = @transform_1, window_bounds = array<i64: 16, 512>}, {pipeline_mode = #tpu.pipeline_mode<synchronous>, transform_indices = @transform_2, window_bounds = array<i64: 1, 512>}, {pipeline_mode = #tpu.pipeline_mode<synchronous>, transform_indices = @transform_3, window_bounds = array<i64: 512, 512>}, {pipeline_mode = #tpu.pipeline_mode<synchronous>, transform_indices = @transform_4, window_bounds = array<i64: 1, 512>}, {pipeline_mode = #tpu.pipeline_mode<synchronous>, transform_indices = @transform_5, window_bounds = array<i64: 512, 512>}, {pipeline_mode = #tpu.pipeline_mode<synchronous>, transform_indices = @transform_6, window_bounds = array<i64: 1, 512>}, {pipeline_mode = #tpu.pipeline_mode<synchronous>, transform_indices = @transform_7, window_bounds = array<i64: 512, 512>}, {pipeline_mode = #tpu.pipeline_mode<synchronous>, transform_indices = @transform_8, window_bounds = array<i64: 1, 512>}, {pipeline_mode = #tpu.pipeline_mode<synchronous>, transform_indices = @transform_9, window_bounds = array<i64: 512, 128>}, {pipeline_mode = #tpu.pipeline_mode<synchronous>, transform_indices = @transform_10, window_bounds = array<i64: 1, 128>}, {transform_indices = @transform_11, window_bounds = array<i64: 8, 128>}]} {
    %c0 = arith.constant 0 : index
    %c0_0 = arith.constant 0 : index
    %0 = vector.load %arg1[%c0, %c0_0] : memref<8x16xbf16, #tpu.memory_space<vmem>>, vector<8x16xbf16>
    %c0_1 = arith.constant 0 : index
    %c0_2 = arith.constant 0 : index
    %1 = vector.load %arg2[%c0_1, %c0_2] : memref<16x512xbf16, #tpu.memory_space<vmem>>, vector<16x512xbf16>
    %cst = arith.constant dense<0.000000e+00> : vector<8x512xf32>
    %2 = tpu.matmul %0, %1, %cst {dimension_numbers = #tpu.dot_dimension_numbers<[1], [0], [0], [1], [0, 0, 1, 1], [], []>} : vector<8x16xbf16>, vector<16x512xbf16>, vector<8x512xf32> -> vector<8x512xf32>
    %c0_3 = arith.constant 0 : index
    %c0_4 = arith.constant 0 : index
    %3 = vector.load %arg3[%c0_3, %c0_4] : memref<1x512xf32, #tpu.memory_space<vmem>>, vector<1x512xf32>
    %4 = vector.broadcast %3 : vector<1x512xf32> to vector<8x512xf32>
    %5 = arith.addf %2, %4 : vector<8x512xf32>
    %cst_5 = arith.constant 0.000000e+00 : f32
    %6 = vector.broadcast %cst_5 : f32 to vector<8x512xf32>
    %7 = arith.maximumf %5, %6 : vector<8x512xf32>
    %8 = arith.truncf %7 : vector<8x512xf32> to vector<8x512xbf16>
    %c0_6 = arith.constant 0 : index
    %c0_7 = arith.constant 0 : index
    %9 = vector.load %arg4[%c0_6, %c0_7] : memref<512x512xbf16, #tpu.memory_space<vmem>>, vector<512x512xbf16>
    %cst_8 = arith.constant dense<0.000000e+00> : vector<8x512xf32>
    %10 = tpu.matmul %8, %9, %cst_8 {dimension_numbers = #tpu.dot_dimension_numbers<[1], [0], [0], [1], [0, 0, 1, 1], [], []>} : vector<8x512xbf16>, vector<512x512xbf16>, vector<8x512xf32> -> vector<8x512xf32>
    %c0_9 = arith.constant 0 : index
    %c0_10 = arith.constant 0 : index
    %11 = vector.load %arg5[%c0_9, %c0_10] : memref<1x512xf32, #tpu.memory_space<vmem>>, vector<1x512xf32>
    %12 = vector.broadcast %11 : vector<1x512xf32> to vector<8x512xf32>
    %13 = arith.addf %10, %12 : vector<8x512xf32>
    %14 = arith.addf %13, %5 : vector<8x512xf32>
    %cst_11 = arith.constant 0.000000e+00 : f32
    %15 = vector.broadcast %cst_11 : f32 to vector<8x512xf32>
    %16 = arith.maximumf %14, %15 : vector<8x512xf32>
    %17 = arith.truncf %16 : vector<8x512xf32> to vector<8x512xbf16>
    %c0_12 = arith.constant 0 : index
    %c0_13 = arith.constant 0 : index
    %18 = vector.load %arg6[%c0_12, %c0_13] : memref<512x512xbf16, #tpu.memory_space<vmem>>, vector<512x512xbf16>
    %cst_14 = arith.constant dense<0.000000e+00> : vector<8x512xf32>
    %19 = tpu.matmul %17, %18, %cst_14 {dimension_numbers = #tpu.dot_dimension_numbers<[1], [0], [0], [1], [0, 0, 1, 1], [], []>} : vector<8x512xbf16>, vector<512x512xbf16>, vector<8x512xf32> -> vector<8x512xf32>
    %c0_15 = arith.constant 0 : index
    %c0_16 = arith.constant 0 : index
    %20 = vector.load %arg7[%c0_15, %c0_16] : memref<1x512xf32, #tpu.memory_space<vmem>>, vector<1x512xf32>
    %21 = vector.broadcast %20 : vector<1x512xf32> to vector<8x512xf32>
    %22 = arith.addf %19, %21 : vector<8x512xf32>
    %23 = arith.addf %22, %14 : vector<8x512xf32>
    %cst_17 = arith.constant 0.000000e+00 : f32
    %24 = vector.broadcast %cst_17 : f32 to vector<8x512xf32>
    %25 = arith.maximumf %23, %24 : vector<8x512xf32>
    %26 = arith.truncf %25 : vector<8x512xf32> to vector<8x512xbf16>
    %c0_18 = arith.constant 0 : index
    %c0_19 = arith.constant 0 : index
    %27 = vector.load %arg8[%c0_18, %c0_19] : memref<512x512xbf16, #tpu.memory_space<vmem>>, vector<512x512xbf16>
    %cst_20 = arith.constant dense<0.000000e+00> : vector<8x512xf32>
    %28 = tpu.matmul %26, %27, %cst_20 {dimension_numbers = #tpu.dot_dimension_numbers<[1], [0], [0], [1], [0, 0, 1, 1], [], []>} : vector<8x512xbf16>, vector<512x512xbf16>, vector<8x512xf32> -> vector<8x512xf32>
    %c0_21 = arith.constant 0 : index
    %c0_22 = arith.constant 0 : index
    %29 = vector.load %arg9[%c0_21, %c0_22] : memref<1x512xf32, #tpu.memory_space<vmem>>, vector<1x512xf32>
    %30 = vector.broadcast %29 : vector<1x512xf32> to vector<8x512xf32>
    %31 = arith.addf %28, %30 : vector<8x512xf32>
    %32 = arith.addf %31, %23 : vector<8x512xf32>
    %33 = arith.truncf %32 : vector<8x512xf32> to vector<8x512xbf16>
    %c0_23 = arith.constant 0 : index
    %c0_24 = arith.constant 0 : index
    %34 = vector.load %arg10[%c0_23, %c0_24] : memref<512x128xbf16, #tpu.memory_space<vmem>>, vector<512x128xbf16>
    %cst_25 = arith.constant dense<0.000000e+00> : vector<8x128xf32>
    %35 = tpu.matmul %33, %34, %cst_25 {dimension_numbers = #tpu.dot_dimension_numbers<[1], [0], [0], [1], [0, 0, 1, 1], [], []>} : vector<8x512xbf16>, vector<512x128xbf16>, vector<8x128xf32> -> vector<8x128xf32>
    %c0_26 = arith.constant 0 : index
    %c0_27 = arith.constant 0 : index
    %36 = vector.load %arg11[%c0_26, %c0_27] : memref<1x128xf32, #tpu.memory_space<vmem>>, vector<1x128xf32>
    %37 = vector.broadcast %36 : vector<1x128xf32> to vector<8x128xf32>
    %38 = arith.addf %35, %37 : vector<8x128xf32>
    %39 = math.tanh %38 : vector<8x128xf32>
    %c0_28 = arith.constant 0 : index
    %c0_29 = arith.constant 0 : index
    %40 = vector.load %arg12[%c0_28, %c0_29] : memref<8x128xf32, #tpu.memory_space<vmem>>, vector<8x128xf32>
    tpu.vector_store %arg12[%c0_28, %c0_29], %39 {strides = array<i32>} : memref<8x128xf32, #tpu.memory_space<vmem>>, vector<8x128xf32>,
    return
  }
  func.func @transform_0(%arg0: i32) -> (i32, i32) {
    %c0_i32 = arith.constant 0 : i32
    %c0_i32_0 = arith.constant 0 : i32
    return %arg0, %c0_i32 : i32, i32
  }
  func.func @transform_1(%arg0: i32) -> (i32, i32) {
    %c0_i32 = arith.constant 0 : i32
    %c0_i32_0 = arith.constant 0 : i32
    %c0_i32_1 = arith.constant 0 : i32
    return %c0_i32, %c0_i32_0 : i32, i32
  }
  func.func @transform_2(%arg0: i32) -> (i32, i32) {
    %c0_i32 = arith.constant 0 : i32
    %c0_i32_0 = arith.constant 0 : i32
    %c0_i32_1 = arith.constant 0 : i32
    return %c0_i32, %c0_i32_0 : i32, i32
  }
  func.func @transform_3(%arg0: i32) -> (i32, i32) {
    %c0_i32 = arith.constant 0 : i32
    %c0_i32_0 = arith.constant 0 : i32
    %c0_i32_1 = arith.constant 0 : i32
    return %c0_i32, %c0_i32_0 : i32, i32
  }
  func.func @transform_4(%arg0: i32) -> (i32, i32) {
    %c0_i32 = arith.constant 0 : i32
    %c0_i32_0 = arith.constant 0 : i32
    %c0_i32_1 = arith.constant 0 : i32
    return %c0_i32, %c0_i32_0 : i32, i32
  }
  func.func @transform_5(%arg0: i32) -> (i32, i32) {
    %c0_i32 = arith.constant 0 : i32
    %c0_i32_0 = arith.constant 0 : i32
    %c0_i32_1 = arith.constant 0 : i32
    return %c0_i32, %c0_i32_0 : i32, i32
  }
  func.func @transform_6(%arg0: i32) -> (i32, i32) {
    %c0_i32 = arith.constant 0 : i32
    %c0_i32_0 = arith.constant 0 : i32
    %c0_i32_1 = arith.constant 0 : i32
    return %c0_i32, %c0_i32_0 : i32, i32
  }
  func.func @transform_7(%arg0: i32) -> (i32, i32) {
    %c0_i32 = arith.constant 0 : i32
    %c0_i32_0 = arith.constant 0 : i32
    %c0_i32_1 = arith.constant 0 : i32
    return %c0_i32, %c0_i32_0 : i32, i32
  }
  func.func @transform_8(%arg0: i32) -> (i32, i32) {
    %c0_i32 = arith.constant 0 : i32
    %c0_i32_0 = arith.constant 0 : i32
    %c0_i32_1 = arith.constant 0 : i32
    return %c0_i32, %c0_i32_0 : i32, i32
  }
  func.func @transform_9(%arg0: i32) -> (i32, i32) {
    %c0_i32 = arith.constant 0 : i32
    %c0_i32_0 = arith.constant 0 : i32
    %c0_i32_1 = arith.constant 0 : i32
    return %c0_i32, %c0_i32_0 : i32, i32
  }
  func.func @transform_10(%arg0: i32) -> (i32, i32) {
    %c0_i32 = arith.constant 0 : i32
    %c0_i32_0 = arith.constant 0 : i32
    %c0_i32_1 = arith.constant 0 : i32
    return %c0_i32, %c0_i32_0 : i32, i32
  }
  func.func @transform_11(%arg0: i32) -> (i32, i32) {
    %c0_i32 = arith.constant 0 : i32
    %c0_i32_0 = arith.constant 0 : i32
    return %arg0, %c0_i32 : i32, i32
  }
}

</mosaic_0001>

<llo_original>
// kernel: _forward.1
$region0: #{_forward.1}
  #allocation0 [shape = 'u32[]', space=smem, size = 0x4, offset = 0x4, fixed_abs, tag = 'smem constant byte address 0x4 - core index']
  #allocation1 [shape = 'u32[144,128]{1,0:T(1,128)}', space=vmem, size = 0x12000, scoped, tag = 'internal scratch']
  %s0 = inlined_call_operand.vmem [shape: bf16[8,16], index: 0, kind: input, shape index: {}]
  %s1 = inlined_call_operand.hbm [shape: bf16[16,512], index: 1, kind: input, shape index: {}]
  %s2 = inlined_call_operand.vmem [shape: f32[1,512], index: 2, kind: input, shape index: {}]
  %s3 = inlined_call_operand.hbm [shape: bf16[512,512], index: 3, kind: input, shape index: {}]
  %s4 = inlined_call_operand.vmem [shape: f32[1,512], index: 4, kind: input, shape index: {}]
  %s5 = inlined_call_operand.hbm [shape: bf16[512,512], index: 5, kind: input, shape index: {}]
  %s6 = inlined_call_operand.vmem [shape: f32[1,512], index: 6, kind: input, shape index: {}]
  %s7 = inlined_call_operand.hbm [shape: bf16[512,512], index: 7, kind: input, shape index: {}]
  %s8 = inlined_call_operand.vmem [shape: f32[1,512], index: 8, kind: input, shape index: {}]
  %s9 = inlined_call_operand.hbm [shape: bf16[512,128], index: 9, kind: input, shape index: {}]
  %s10 = inlined_call_operand.vmem [shape: f32[1,128], index: 10, kind: input, shape index: {}]
  %s11 = inlined_call_operand.vmem [shape: f32[8,128], index: 11, kind: output, shape index: {}]
  %s12 = sld [smem:[#allocation0]]
  $region74: #{_forward.1} parent=0
    _
  %s14 = ssub.s32 1, %s12
  %s15 = scalar_select 0, %s14, %s12
  $region1: #{_forward.1} parent=0
    #allocation2 [shape = 'u8[16384]{0}', space=vmem, size = 0x4000, scoped, tag = 'input window, operand 1, single buffered']
    #allocation3 [shape = 's32[1]{0}', space=sflag, size = 0x4, scoped, tag = 'scoped memory for _forward.1']
    #allocation4 [shape = 'u8[524288]{0}', space=vmem, size = 0x80000, scoped, tag = 'input window, operand 3, single buffered']
    #allocation5 [shape = 's32[1]{0}', space=sflag, size = 0x4, scoped, tag = 'scoped memory for _forward.1']
    #allocation6 [shape = 'u8[524288]{0}', space=vmem, size = 0x80000, scoped, tag = 'input window, operand 5, single buffered']
    #allocation7 [shape = 'u8[524288]{0}', space=vmem, size = 0x80000, scoped, tag = 'input window, operand 7, single buffered']
    #allocation8 [shape = 's32[1]{0}', space=sflag, size = 0x4, scoped, tag = 'scoped memory for _forward.1']
    #allocation9 [shape = 'u8[131072]{0}', space=vmem, size = 0x20000, scoped, tag = 'input window, operand 9, single buffered']
    %16 = vsyncpa [#allocation3], 0
    %17 = vsyncpa [#allocation5], 0
    %18 = vsyncpa [#allocation8], 0
    // Predicated region
    $region2: #{_forward.1} parent=1 // pred_check
      _
    $region3: #{_forward.1} parent=1 // pred_check_branch
      %20 = sbr.rel (0) target = $region5
    $region4: #{_forward.1} parent=1 // pred_region
      _
    $region5: #{_forward.1} parent=1 // pred_fallthru
      _
    // Predicated region
    $region6: #{_forward.1} parent=1 // pred_check
      _
    $region7: #{_forward.1} parent=1 // pred_check_branch
      %22 = sbr.rel (0) target = $region9
    $region8: #{_forward.1} parent=1 // pred_region
      %s24 = ssub.s32 512, 512
      %25 = vsyncadd [#allocation3], %s24
      %s26 = sshll.u32 [#allocation2], 4
      %s27 = int_to_ptr.vmem [resolvable:$true] %s26
      %32 = dma.hbm_to_vmem [thread:$0]  %s1, 512, %s27, [#allocation3], 256, 256, 16
    $region9: #{_forward.1} parent=1 // pred_fallthru
      _
    // Predicated region
    $region10: #{_forward.1} parent=1 // pred_check
      _
    $region11: #{_forward.1} parent=1 // pred_check_branch
      %34 = sbr.rel (0) target = $region13
    $region12: #{_forward.1} parent=1 // pred_region
      _
    $region13: #{_forward.1} parent=1 // pred_fallthru
      _
    // Predicated region
    $region14: #{_forward.1} parent=1 // pred_check
      _
    $region15: #{_forward.1} parent=1 // pred_check_branch
      %36 = sbr.rel (0) target = $region17
    $region16: #{_forward.1} parent=1 // pred_region
      %s38 = ssub.s32 16384, 16384
      %39 = vsyncadd [#allocation5], %s38
      %s40 = sshll.u32 [#allocation4], 4
      %s41 = int_to_ptr.vmem [resolvable:$true] %s40
      %46 = dma.hbm_to_vmem [thread:$0]  %s3, 16384, %s41, [#allocation5], 256, 256, 16
    $region17: #{_forward.1} parent=1 // pred_fallthru
      _
    // Predicated region
    $region18: #{_forward.1} parent=1 // pred_check
      _
    $region19: #{_forward.1} parent=1 // pred_check_branch
      %48 = sbr.rel (0) target = $region21
    $region20: #{_forward.1} parent=1 // pred_region
      _
    $region21: #{_forward.1} parent=1 // pred_fallthru
      _
    // Predicated region
    $region22: #{_forward.1} parent=1 // pred_check
      _
    $region23: #{_forward.1} parent=1 // pred_check_branch
      %50 = sbr.rel (0) target = $region25
    $region24: #{_forward.1} parent=1 // pred_region
      %s52 = ssub.s32 16384, 16384
      %53 = vsyncadd [#allocation5], %s52
      %s54 = sshll.u32 [#allocation6], 4
      %s55 = int_to_ptr.vmem [resolvable:$true] %s54
      %60 = dma.hbm_to_vmem [thread:$0]  %s5, 16384, %s55, [#allocation5], 256, 256, 16
    $region25: #{_forward.1} parent=1 // pred_fallthru
      _
    // Predicated region
    $region26: #{_forward.1} parent=1 // pred_check
      _
    $region27: #{_forward.1} parent=1 // pred_check_branch
      %62 = sbr.rel (0) target = $region29
    $region28: #{_forward.1} parent=1 // pred_region
      _
    $region29: #{_forward.1} parent=1 // pred_fallthru
      _
    // Predicated region
    $region30: #{_forward.1} parent=1 // pred_check
      _
    $region31: #{_forward.1} parent=1 // pred_check_branch
      %64 = sbr.rel (0) target = $region33
    $region32: #{_forward.1} parent=1 // pred_region
      %s66 = ssub.s32 16384, 16384
      %67 = vsyncadd [#allocation8], %s66
      %s68 = sshll.u32 [#allocation7], 4
      %s69 = int_to_ptr.vmem [resolvable:$true] %s68
      %74 = dma.hbm_to_vmem [thread:$0]  %s7, 16384, %s69, [#allocation8], 256, 256, 16
    $region33: #{_forward.1} parent=1 // pred_fallthru
      _
    // Predicated region
    $region34: #{_forward.1} parent=1 // pred_check
      _
    $region35: #{_forward.1} parent=1 // pred_check_branch
      %76 = sbr.rel (0) target = $region37
    $region36: #{_forward.1} parent=1 // pred_region
      _
    $region37: #{_forward.1} parent=1 // pred_fallthru
      _
    // Predicated region
    $region38: #{_forward.1} parent=1 // pred_check
      _
    $region39: #{_forward.1} parent=1 // pred_check_branch
      %78 = sbr.rel (0) target = $region41
    $region40: #{_forward.1} parent=1 // pred_region
      %s80 = ssub.s32 4096, 4096
      %81 = vsyncadd [#allocation8], %s80
      %s82 = sshll.u32 [#allocation9], 4
      %s83 = int_to_ptr.vmem [resolvable:$true] %s82
      %88 = dma.hbm_to_vmem [thread:$0]  %s9, 4096, %s83, [#allocation8], 64, 64, 4
    $region41: #{_forward.1} parent=1 // pred_fallthru
      _
    // Predicated region
    $region42: #{_forward.1} parent=1 // pred_check
      _
    $region43: #{_forward.1} parent=1 // pred_check_branch
      %90 = sbr.rel (0) target = $region45
    $region44: #{_forward.1} parent=1 // pred_region
      _
    $region45: #{_forward.1} parent=1 // pred_fallthru
      _
    // Predicated region
    $region46: #{_forward.1} parent=1 // pred_check
      _
    $region47: #{_forward.1} parent=1 // pred_check_branch
      %92 = sbr.rel (0) target = $region49
    $region48: #{_forward.1} parent=1 // pred_region
      %93 = dma.done [#allocation3], 512
    $region49: #{_forward.1} parent=1 // pred_fallthru
      _
    // Predicated region
    $region50: #{_forward.1} parent=1 // pred_check
      _
    $region51: #{_forward.1} parent=1 // pred_check_branch
      %95 = sbr.rel (0) target = $region53
    $region52: #{_forward.1} parent=1 // pred_region
      %96 = dma.done [#allocation5], 16384
    $region53: #{_forward.1} parent=1 // pred_fallthru
      _
    // Predicated region
    $region54: #{_forward.1} parent=1 // pred_check
      _
    $region55: #{_forward.1} parent=1 // pred_check_branch
      %98 = sbr.rel (0) target = $region57
    $region56: #{_forward.1} parent=1 // pred_region
      %99 = dma.done [#allocation5], 16384
    $region57: #{_forward.1} parent=1 // pred_fallthru
      _
    // Predicated region
    $region58: #{_forward.1} parent=1 // pred_check
      _
    $region59: #{_forward.1} parent=1 // pred_check_branch
      %101 = sbr.rel (0) target = $region61
    $region60: #{_forward.1} parent=1 // pred_region
      %102 = dma.done [#allocation8], 16384
    $region61: #{_forward.1} parent=1 // pred_fallthru
      _
    // Predicated region
    $region62: #{_forward.1} parent=1 // pred_check
      _
    $region63: #{_forward.1} parent=1 // pred_check_branch
      %104 = sbr.rel (0) target = $region65
    $region64: #{_forward.1} parent=1 // pred_region
      %105 = dma.done [#allocation8], 4096
    $region65: #{_forward.1} parent=1 // pred_fallthru
      _
    %v107 = vld [vmem:[%s0] sm:$0xf]
    %v108 = vld [vmem:[#allocation2] sm:$0xff]
    %v109 = vld [vmem:[#allocation2 + $0x8] sm:$0xff]
    %v110 = vld [vmem:[#allocation2 + $0x10] sm:$0xff]
    %v111 = vld [vmem:[#allocation2 + $0x18] sm:$0xff]
    %v112 = vld [vmem:[%s2] sm:$0xf]
    %v114 = vlaneseq
    %v115 = vshrl.u32 %v114, 7
    %v116 = vsub.s32 0, %v115
    %v117 = vrot.slane %v112, %v116
    %v118 = vlaneseq
    %v119 = vshrl.u32 %v118, 7
    %v120 = vsub.s32 1, %v119
    %v121 = vrot.slane %v112, %v120
    %v122 = vlaneseq
    %v123 = vshrl.u32 %v122, 7
    %v124 = vsub.s32 2, %v123
    %v125 = vrot.slane %v112, %v124
    %v126 = vlaneseq
    %v127 = vshrl.u32 %v126, 7
    %v128 = vsub.s32 3, %v127
    %v129 = vrot.slane %v112, %v128
    %v138 = vunpack.c.l.b16 %v108
    %v139 = vunpack.c.h.b16 %v108
    %v140 = vunpack.c.l.b16 %v109
    %v141 = vunpack.c.h.b16 %v109
    %v142 = vunpack.c.l.b16 %v110
    %v143 = vunpack.c.h.b16 %v110
    %v144 = vunpack.c.l.b16 %v111
    %v145 = vunpack.c.h.b16 %v111
    %v146 = vpack.c.b16 %v142, %v138
    %v147 = vpack.c.b16 %v143, %v139
    %v148 = vpack.c.b16 %v144, %v140
    %v149 = vpack.c.b16 %v145, %v141
    %vm154 = vcmask 130048
    %v156 = vsel %vm154, %v107, 0
    %158 = vmatprep.subr.bf16.mxu0 0
    %159 = vmatpush1.bf16.msra.mxu0 0
    %160 = vmatprep.subr.bf16.mxu0 0
    %161 = vmatpush1.bf16.msra.mxu0 0
    %162 = vmatprep.subr.bf16.mxu0 0
    %163 = vmatpush1.bf16.msra.mxu0 0
    %164 = vmatprep.subr.bf16.mxu0 0
    %165 = vmatpush1.bf16.msra.mxu0 0
    %166 = vmatprep.subr.bf16.mxu0 0
    %167 = vmatpush1.bf16.msra.mxu0 0
    %168 = vmatprep.subr.bf16.mxu0 0
    %169 = vmatpush1.bf16.msra.mxu0 0
    %170 = vmatprep.subr.bf16.mxu0 0
    %171 = vmatpush1.bf16.msra.mxu0 0
    %172 = vmatprep.subr.bf16.mxu0 %v147
    %173 = vmatpush1.bf16.msra.mxu0 %v146
    %174 = vmatprep.subr.bf16.mxu0 0
    %175 = vmatpush2.bf16.msra.mxu0 0
    %176 = vmatprep.subr.bf16.mxu0 0
    %177 = vmatpush2.bf16.msra.mxu0 0
    %178 = vmatprep.subr.bf16.mxu0 0
    %179 = vmatpush2.bf16.msra.mxu0 0
    %180 = vmatprep.subr.bf16.mxu0 0
    %181 = vmatpush2.bf16.msra.mxu0 0
    %182 = vmatprep.subr.bf16.mxu0 0
    %183 = vmatpush2.bf16.msra.mxu0 0
    %184 = vmatprep.subr.bf16.mxu0 0
    %185 = vmatpush2.bf16.msra.mxu0 0
    %186 = vmatprep.subr.bf16.mxu0 0
    %187 = vmatpush2.bf16.msra.mxu0 0
    %188 = vmatprep.subr.bf16.mxu0 0
    %189 = vmatpush2.bf16.msra.mxu0 0
    %190 = vmatprep.mubr.bf16.mxu0 0
    %191 = vmatmul.mubr.bf16.gmra.mxu0 %v156
    %v192 = vpop.f32.mrf.mxu0
    %v193 = vadd.f32 %v117, %v192
    %v194 = vpop.f32.mrf.mxu0
    %v195 = vadd.f32 %v121, %v194
    %v196 = vpop.f32.mrf.mxu0
    %v197 = vpop.f32.mrf.mxu0
    %198 = vdwg.mxu0
    %199 = vmatprep.subr.bf16.mxu0 0
    %200 = vmatpush1.bf16.msra.mxu0 0
    %201 = vmatprep.subr.bf16.mxu0 0
    %202 = vmatpush1.bf16.msra.mxu0 0
    %203 = vmatprep.subr.bf16.mxu0 0
    %204 = vmatpush1.bf16.msra.mxu0 0
    %205 = vmatprep.subr.bf16.mxu0 0
    %206 = vmatpush1.bf16.msra.mxu0 0
    %207 = vmatprep.subr.bf16.mxu0 0
    %208 = vmatpush1.bf16.msra.mxu0 0
    %209 = vmatprep.subr.bf16.mxu0 0
    %210 = vmatpush1.bf16.msra.mxu0 0
    %211 = vmatprep.subr.bf16.mxu0 0
    %212 = vmatpush1.bf16.msra.mxu0 0
    %213 = vmatprep.subr.bf16.mxu0 %v149
    %214 = vmatpush1.bf16.msra.mxu0 %v148
    %215 = vmatprep.subr.bf16.mxu0 0
    %216 = vmatpush2.bf16.msra.mxu0 0
    %217 = vmatprep.subr.bf16.mxu0 0
    %218 = vmatpush2.bf16.msra.mxu0 0
    %219 = vmatprep.subr.bf16.mxu0 0
    %220 = vmatpush2.bf16.msra.mxu0 0
    %221 = vmatprep.subr.bf16.mxu0 0
    %222 = vmatpush2.bf16.msra.mxu0 0
    %223 = vmatprep.subr.bf16.mxu0 0
    %224 = vmatpush2.bf16.msra.mxu0 0
    %225 = vmatprep.subr.bf16.mxu0 0
    %226 = vmatpush2.bf16.msra.mxu0 0
    %227 = vmatprep.subr.bf16.mxu0 0
    %228 = vmatpush2.bf16.msra.mxu0 0
    %229 = vmatprep.subr.bf16.mxu0 0
    %230 = vmatpush2.bf16.msra.mxu0 0
    %231 = vmatprep.mubr.bf16.mxu0 0
    %232 = vmatmul.mubr.bf16.gmra.mxu0 %v156
    %v233 = vpop.f32.mrf.mxu0
    %v234 = vadd.f32 %v125, %v233
    %v235 = vpop.f32.mrf.mxu0
    %v236 = vadd.f32 %v129, %v235
    %v237 = vpop.f32.mrf.mxu0
    %v238 = vpop.f32.mrf.mxu0
    %239 = vdwg.mxu0
    %v240 = vmax.f32 %v193, 0.0
    %v241 = vmax.f32 %v195, 0.0
    %v242 = vmax.f32 %v234, 0.0
    %v243 = vmax.f32 %v236, 0.0
    %v244 = vpack.c.bf16 %v240, %v240
    %v245 = vpack.c.bf16 %v241, %v241
    %v246 = vpack.c.bf16 %v242, %v242
    %v247 = vpack.c.bf16 %v243, %v243
    %v248 = vld [vmem:[#allocation4] sm:$0xff]
    %v249 = vld [vmem:[#allocation4 + $0x8] sm:$0xff]
    %v250 = vld [vmem:[#allocation4 + $0x10] sm:$0xff]
    %v251 = vld [vmem:[#allocation4 + $0x18] sm:$0xff]
    %v252 = vld [vmem:[#allocation4 + $0x20] sm:$0xff]
    %v253 = vld [vmem:[#allocation4 + $0x28] sm:$0xff]
    %v254 = vld [vmem:[#allocation4 + $0x30] sm:$0xff]
    %v255 = vld [vmem:[#allocation4 + $0x38] sm:$0xff]
    %v256 = vld [vmem:[#allocation4 + $0x40] sm:$0xff]
    %v257 = vld [vmem:[#allocation4 + $0x48] sm:$0xff]
    %v258 = vld [vmem:[#allocation4 + $0x50] sm:$0xff]
    %v259 = vld [vmem:[#allocation4 + $0x58] sm:$0xff]
    %v260 = vld [vmem:[#allocation4 + $0x60] sm:$0xff]
    %v261 = vld [vmem:[#allocation4 + $0x68] sm:$0xff]
    %v262 = vld [vmem:[#allocation4 + $0x70] sm:$0xff]
    %v263 = vld [vmem:[#allocation4 + $0x78] sm:$0xff]
    %v264 = vld [vmem:[#allocation4 + $0x80] sm:$0xff]
    %v265 = vld [vmem:[#allocation4 + $0x88] sm:$0xff]
    %v266 = vld [vmem:[#allocation4 + $0x90] sm:$0xff]
    %v267 = vld [vmem:[#allocation4 + $0x98] sm:$0xff]
    %v268 = vld [vmem:[#allocation4 + $0xa0] sm:$0xff]
    %v269 = vld [vmem:[#allocation4 + $0xa8] sm:$0xff]
    %v270 = vld [vmem:[#allocation4 + $0xb0] sm:$0xff]
    %v271 = vld [vmem:[#allocation4 + $0xb8] sm:$0xff]
    %v272 = vld [vmem:[#allocation4 + $0xc0] sm:$0xff]
    %v273 = vld [vmem:[#allocation4 + $0xc8] sm:$0xff]
    %v274 = vld [vmem:[#allocation4 + $0xd0] sm:$0xff]
    %v275 = vld [vmem:[#allocation4 + $0xd8] sm:$0xff]
    %v276 = vld [vmem:[#allocation4 + $0xe0] sm:$0xff]
    %v277 = vld [vmem:[#allocation4 + $0xe8] sm:$0xff]
    %v278 = vld [vmem:[#allocation4 + $0xf0] sm:$0xff]
    %v279 = vld [vmem:[#allocation4 + $0xf8] sm:$0xff]
    %v280 = vld [vmem:[#allocation4 + $0x100] sm:$0xff]
    %v281 = vld [vmem:[#allocation4 + $0x108] sm:$0xff]
    %v282 = vld [vmem:[#allocation4 + $0x110] sm:$0xff]
    %v283 = vld [vmem:[#allocation4 + $0x118] sm:$0xff]
    %v284 = vld [vmem:[#allocation4 + $0x120] sm:$0xff]
    %v285 = vld [vmem:[#allocation4 + $0x128] sm:$0xff]
    %v286 = vld [vmem:[#allocation4 + $0x130] sm:$0xff]
    %v287 = vld [vmem:[#allocation4 + $0x138] sm:$0xff]
    %v288 = vld [vmem:[#allocation4 + $0x140] sm:$0xff]
    %v289 = vld [vmem:[#allocation4 + $0x148] sm:$0xff]
    %v290 = vld [vmem:[#allocation4 + $0x150] sm:$0xff]
    %v291 = vld [vmem:[#allocation4 + $0x158] sm:$0xff]
    %v292 = vld [vmem:[#allocation4 + $0x160] sm:$0xff]
    %v293 = vld [vmem:[#allocation4 + $0x168] sm:$0xff]
    %v294 = vld [vmem:[#allocation4 + $0x170] sm:$0xff]
    %v295 = vld [vmem:[#allocation4 + $0x178] sm:$0xff]
    %v296 = vld [vmem:[#allocation4 + $0x180] sm:$0xff]
    %v297 = vld [vmem:[#allocation4 + $0x188] sm:$0xff]
    %v298 = vld [vmem:[#allocation4 + $0x190] sm:$0xff]
    %v299 = vld [vmem:[#allocation4 + $0x198] sm:$0xff]
    %v300 = vld [vmem:[#allocation4 + $0x1a0] sm:$0xff]
    %v301 = vld [vmem:[#allocation4 + $0x1a8] sm:$0xff]
    %v302 = vld [vmem:[#allocation4 + $0x1b0] sm:$0xff]
    %v303 = vld [vmem:[#allocation4 + $0x1b8] sm:$0xff]
    %v304 = vld [vmem:[#allocation4 + $0x1c0] sm:$0xff]
    %v305 = vld [vmem:[#allocation4 + $0x1c8] sm:$0xff]
    %v306 = vld [vmem:[#allocation4 + $0x1d0] sm:$0xff]
    %v307 = vld [vmem:[#allocation4 + $0x1d8] sm:$0xff]
    %v308 = vld [vmem:[#allocation4 + $0x1e0] sm:$0xff]
    %v309 = vld [vmem:[#allocation4 + $0x1e8] sm:$0xff]
    %v310 = vld [vmem:[#allocation4 + $0x1f0] sm:$0xff]
    %v311 = vld [vmem:[#allocation4 + $0x1f8] sm:$0xff]
    %v312 = vld [vmem:[#allocation4 + $0x200] sm:$0xff]
    %v313 = vld [vmem:[#allocation4 + $0x208] sm:$0xff]
    %v314 = vld [vmem:[#allocation4 + $0x210] sm:$0xff]
    %v315 = vld [vmem:[#allocation4 + $0x218] sm:$0xff]
    %v316 = vld [vmem:[#allocation4 + $0x220] sm:$0xff]
    %v317 = vld [vmem:[#allocation4 + $0x228] sm:$0xff]
    %v318 = vld [vmem:[#allocation4 + $0x230] sm:$0xff]
    %v319 = vld [vmem:[#allocation4 + $0x238] sm:$0xff]
    %v320 = vld [vmem:[#allocation4 + $0x240] sm:$0xff]
    %v321 = vld [vmem:[#allocation4 + $0x248] sm:$0xff]
    %v322 = vld [vmem:[#allocation4 + $0x250] sm:$0xff]
    %v323 = vld [vmem:[#allocation4 + $0x258] sm:$0xff]
    %v324 = vld [vmem:[#allocation4 + $0x260] sm:$0xff]
    %v325 = vld [vmem:[#allocation4 + $0x268] sm:$0xff]
    %v326 = vld [vmem:[#allocation4 + $0x270] sm:$0xff]
    %v327 = vld [vmem:[#allocation4 + $0x278] sm:$0xff]
    %v328 = vld [vmem:[#allocation4 + $0x280] sm:$0xff]
    %v329 = vld [vmem:[#allocation4 + $0x288] sm:$0xff]
    %v330 = vld [vmem:[#allocation4 + $0x290] sm:$0xff]
    %v331 = vld [vmem:[#allocation4 + $0x298] sm:$0xff]
    %v332 = vld [vmem:[#allocation4 + $0x2a0] sm:$0xff]
    %v333 = vld [vmem:[#allocation4 + $0x2a8] sm:$0xff]
    %v334 = vld [vmem:[#allocation4 + $0x2b0] sm:$0xff]
    %v335 = vld [vmem:[#allocation4 + $0x2b8] sm:$0xff]
    %v336 = vld [vmem:[#allocation4 + $0x2c0] sm:$0xff]
    %v337 = vld [vmem:[#allocation4 + $0x2c8] sm:$0xff]
    %v338 = vld [vmem:[#allocation4 + $0x2d0] sm:$0xff]
    %v339 = vld [vmem:[#allocation4 + $0x2d8] sm:$0xff]
    %v340 = vld [vmem:[#allocation4 + $0x2e0] sm:$0xff]
    %v341 = vld [vmem:[#allocation4 + $0x2e8] sm:$0xff]
    %v342 = vld [vmem:[#allocation4 + $0x2f0] sm:$0xff]
    %v343 = vld [vmem:[#allocation4 + $0x2f8] sm:$0xff]
    %v344 = vld [vmem:[#allocation4 + $0x300] sm:$0xff]
    %v345 = vld [vmem:[#allocation4 + $0x308] sm:$0xff]
    %v346 = vld [vmem:[#allocation4 + $0x310] sm:$0xff]
    %v347 = vld [vmem:[#allocation4 + $0x318] sm:$0xff]
    %v348 = vld [vmem:[#allocation4 + $0x320] sm:$0xff]
    %v349 = vld [vmem:[#allocation4 + $0x328] sm:$0xff]
    %v350 = vld [vmem:[#allocation4 + $0x330] sm:$0xff]
    %v351 = vld [vmem:[#allocation4 + $0x338] sm:$0xff]
    %v352 = vld [vmem:[#allocation4 + $0x340] sm:$0xff]
    %v353 = vld [vmem:[#allocation4 + $0x348] sm:$0xff]
    %v354 = vld [vmem:[#allocation4 + $0x350] sm:$0xff]
    %v355 = vld [vmem:[#allocation4 + $0x358] sm:$0xff]
    %v356 = vld [vmem:[#allocation4 + $0x360] sm:$0xff]
    %v357 = vld [vmem:[#allocation4 + $0x368] sm:$0xff]
    %v358 = vld [vmem:[#allocation4 + $0x370] sm:$0xff]
    %v359 = vld [vmem:[#allocation4 + $0x378] sm:$0xff]
    %v360 = vld [vmem:[#allocation4 + $0x380] sm:$0xff]
    %v361 = vld [vmem:[#allocation4 + $0x388] sm:$0xff]
    %v362 = vld [vmem:[#allocation4 + $0x390] sm:$0xff]
    %v363 = vld [vmem:[#allocation4 + $0x398] sm:$0xff]
    %v364 = vld [vmem:[#allocation4 + $0x3a0] sm:$0xff]
    %v365 = vld [vmem:[#allocation4 + $0x3a8] sm:$0xff]
    %v366 = vld [vmem:[#allocation4 + $0x3b0] sm:$0xff]
    %v367 = vld [vmem:[#allocation4 + $0x3b8] sm:$0xff]
    %v368 = vld [vmem:[#allocation4 + $0x3c0] sm:$0xff]
    %v369 = vld [vmem:[#allocation4 + $0x3c8] sm:$0xff]
    %v370 = vld [vmem:[#allocation4 + $0x3d0] sm:$0xff]
    %v371 = vld [vmem:[#allocation4 + $0x3d8] sm:$0xff]
    %v372 = vld [vmem:[#allocation4 + $0x3e0] sm:$0xff]
    %v373 = vld [vmem:[#allocation4 + $0x3e8] sm:$0xff]
    %v374 = vld [vmem:[#allocation4 + $0x3f0] sm:$0xff]
    %v375 = vld [vmem:[#allocation4 + $0x3f8] sm:$0xff]
    %v376 = vld [vmem:[%s4] sm:$0xf]
    %v378 = vlaneseq
    %v379 = vshrl.u32 %v378, 7
    %v380 = vsub.s32 0, %v379
    %v381 = vrot.slane %v376, %v380
    %v382 = vlaneseq
    %v383 = vshrl.u32 %v382, 7
    %v384 = vsub.s32 1, %v383
    %v385 = vrot.slane %v376, %v384
    %v386 = vlaneseq
    %v387 = vshrl.u32 %v386, 7
    %v388 = vsub.s32 2, %v387
    %v389 = vrot.slane %v376, %v388
    %v390 = vlaneseq
    %v391 = vshrl.u32 %v390, 7
    %v392 = vsub.s32 3, %v391
    %v393 = vrot.slane %v376, %v392
    %v526 = vunpack.c.l.b16 %v248
    %v527 = vunpack.c.h.b16 %v248
    %v528 = vunpack.c.l.b16 %v249
    %v529 = vunpack.c.h.b16 %v249
    %v530 = vunpack.c.l.b16 %v250
    %v531 = vunpack.c.h.b16 %v250
    %v532 = vunpack.c.l.b16 %v251
    %v533 = vunpack.c.h.b16 %v251
    %v534 = vunpack.c.l.b16 %v252
    %v535 = vunpack.c.h.b16 %v252
    %v536 = vunpack.c.l.b16 %v253
    %v537 = vunpack.c.h.b16 %v253
    %v538 = vunpack.c.l.b16 %v254
    %v539 = vunpack.c.h.b16 %v254
    %v540 = vunpack.c.l.b16 %v255
    %v541 = vunpack.c.h.b16 %v255
    %v542 = vunpack.c.l.b16 %v256
    %v543 = vunpack.c.h.b16 %v256
    %v544 = vunpack.c.l.b16 %v257
    %v545 = vunpack.c.h.b16 %v257
    %v546 = vunpack.c.l.b16 %v258
    %v547 = vunpack.c.h.b16 %v258
    %v548 = vunpack.c.l.b16 %v259
    %v549 = vunpack.c.h.b16 %v259
    %v550 = vunpack.c.l.b16 %v260
    %v551 = vunpack.c.h.b16 %v260
    %v552 = vunpack.c.l.b16 %v261
    %v553 = vunpack.c.h.b16 %v261
    %v554 = vunpack.c.l.b16 %v262
    %v555 = vunpack.c.h.b16 %v262
    %v556 = vunpack.c.l.b16 %v263
    %v557 = vunpack.c.h.b16 %v263
    %v558 = vunpack.c.l.b16 %v264
    %v559 = vunpack.c.h.b16 %v264
    %v560 = vunpack.c.l.b16 %v265
    %v561 = vunpack.c.h.b16 %v265
    %v562 = vunpack.c.l.b16 %v266
    %v563 = vunpack.c.h.b16 %v266
    %v564 = vunpack.c.l.b16 %v267
    %v565 = vunpack.c.h.b16 %v267
    %v566 = vunpack.c.l.b16 %v268
    %v567 = vunpack.c.h.b16 %v268
    %v568 = vunpack.c.l.b16 %v269
    %v569 = vunpack.c.h.b16 %v269
    %v570 = vunpack.c.l.b16 %v270
    %v571 = vunpack.c.h.b16 %v270
    %v572 = vunpack.c.l.b16 %v271
    %v573 = vunpack.c.h.b16 %v271
    %v574 = vunpack.c.l.b16 %v272
    %v575 = vunpack.c.h.b16 %v272
    %v576 = vunpack.c.l.b16 %v273
    %v577 = vunpack.c.h.b16 %v273
    %v578 = vunpack.c.l.b16 %v274
    %v579 = vunpack.c.h.b16 %v274
    %v580 = vunpack.c.l.b16 %v275
    %v581 = vunpack.c.h.b16 %v275
    %v582 = vunpack.c.l.b16 %v276
    %v583 = vunpack.c.h.b16 %v276
    %v584 = vunpack.c.l.b16 %v277
    %v585 = vunpack.c.h.b16 %v277
    %v586 = vunpack.c.l.b16 %v278
    %v587 = vunpack.c.h.b16 %v278
    %v588 = vunpack.c.l.b16 %v279
    %v589 = vunpack.c.h.b16 %v279
    %v590 = vunpack.c.l.b16 %v280
    %v591 = vunpack.c.h.b16 %v280
    %v592 = vunpack.c.l.b16 %v281
    %v593 = vunpack.c.h.b16 %v281
    %v594 = vunpack.c.l.b16 %v282
    %v595 = vunpack.c.h.b16 %v282
    %v596 = vunpack.c.l.b16 %v283
    %v597 = vunpack.c.h.b16 %v283
    %v598 = vunpack.c.l.b16 %v284
    %v599 = vunpack.c.h.b16 %v284
    %v600 = vunpack.c.l.b16 %v285
    %v601 = vunpack.c.h.b16 %v285
    %v602 = vunpack.c.l.b16 %v286
    %v603 = vunpack.c.h.b16 %v286
    %v604 = vunpack.c.l.b16 %v287
    %v605 = vunpack.c.h.b16 %v287
    %v606 = vunpack.c.l.b16 %v288
    %v607 = vunpack.c.h.b16 %v288
    %v608 = vunpack.c.l.b16 %v289
    %v609 = vunpack.c.h.b16 %v289
    %v610 = vunpack.c.l.b16 %v290
    %v611 = vunpack.c.h.b16 %v290
    %v612 = vunpack.c.l.b16 %v291
    %v613 = vunpack.c.h.b16 %v291
    %v614 = vunpack.c.l.b16 %v292
    %v615 = vunpack.c.h.b16 %v292
    %v616 = vunpack.c.l.b16 %v293
    %v617 = vunpack.c.h.b16 %v293
    %v618 = vunpack.c.l.b16 %v294
    %v619 = vunpack.c.h.b16 %v294
    %v620 = vunpack.c.l.b16 %v295
    %v621 = vunpack.c.h.b16 %v295
    %v622 = vunpack.c.l.b16 %v296
    %v623 = vunpack.c.h.b16 %v296
    %v624 = vunpack.c.l.b16 %v297
    %v625 = vunpack.c.h.b16 %v297
    %v626 = vunpack.c.l.b16 %v298
    %v627 = vunpack.c.h.b16 %v298
    %v628 = vunpack.c.l.b16 %v299
    %v629 = vunpack.c.h.b16 %v299
    %v630 = vunpack.c.l.b16 %v300
    %v631 = vunpack.c.h.b16 %v300
    %v632 = vunpack.c.l.b16 %v301
    %v633 = vunpack.c.h.b16 %v301
    %v634 = vunpack.c.l.b16 %v302
    %v635 = vunpack.c.h.b16 %v302
    %v636 = vunpack.c.l.b16 %v303
    %v637 = vunpack.c.h.b16 %v303
    %v638 = vunpack.c.l.b16 %v304
    %v639 = vunpack.c.h.b16 %v304
    %v640 = vunpack.c.l.b16 %v305
    %v641 = vunpack.c.h.b16 %v305
    %v642 = vunpack.c.l.b16 %v306
    %v643 = vunpack.c.h.b16 %v306
    %v644 = vunpack.c.l.b16 %v307
    %v645 = vunpack.c.h.b16 %v307
    %v646 = vunpack.c.l.b16 %v308
    %v647 = vunpack.c.h.b16 %v308
    %v648 = vunpack.c.l.b16 %v309
    %v649 = vunpack.c.h.b16 %v309
    %v650 = vunpack.c.l.b16 %v310
    %v651 = vunpack.c.h.b16 %v310
    %v652 = vunpack.c.l.b16 %v311
    %v653 = vunpack.c.h.b16 %v311
    %v654 = vunpack.c.l.b16 %v312
    %v655 = vunpack.c.h.b16 %v312
    %v656 = vunpack.c.l.b16 %v313
    %v657 = vunpack.c.h.b16 %v313
    %v658 = vunpack.c.l.b16 %v314
    %v659 = vunpack.c.h.b16 %v314
    %v660 = vunpack.c.l.b16 %v315
    %v661 = vunpack.c.h.b16 %v315
    %v662 = vunpack.c.l.b16 %v316
    %v663 = vunpack.c.h.b16 %v316
    %v664 = vunpack.c.l.b16 %v317
    %v665 = vunpack.c.h.b16 %v317
    %v666 = vunpack.c.l.b16 %v318
    %v667 = vunpack.c.h.b16 %v318
    %v668 = vunpack.c.l.b16 %v319
    %v669 = vunpack.c.h.b16 %v319
    %v670 = vunpack.c.l.b16 %v320
    %v671 = vunpack.c.h.b16 %v320
    %v672 = vunpack.c.l.b16 %v321
    %v673 = vunpack.c.h.b16 %v321
    %v674 = vunpack.c.l.b16 %v322
    %v675 = vunpack.c.h.b16 %v322
    %v676 = vunpack.c.l.b16 %v323
    %v677 = vunpack.c.h.b16 %v323
    %v678 = vunpack.c.l.b16 %v324
    %v679 = vunpack.c.h.b16 %v324
    %v680 = vunpack.c.l.b16 %v325
    %v681 = vunpack.c.h.b16 %v325
    %v682 = vunpack.c.l.b16 %v326
    %v683 = vunpack.c.h.b16 %v326
    %v684 = vunpack.c.l.b16 %v327
    %v685 = vunpack.c.h.b16 %v327
    %v686 = vunpack.c.l.b16 %v328
    %v687 = vunpack.c.h.b16 %v328
    %v688 = vunpack.c.l.b16 %v329
    %v689 = vunpack.c.h.b16 %v329
    %v690 = vunpack.c.l.b16 %v330
    %v691 = vunpack.c.h.b16 %v330
    %v692 = vunpack.c.l.b16 %v331
    %v693 = vunpack.c.h.b16 %v331
    %v694 = vunpack.c.l.b16 %v332
    %v695 = vunpack.c.h.b16 %v332
    %v696 = vunpack.c.l.b16 %v333
    %v697 = vunpack.c.h.b16 %v333
    %v698 = vunpack.c.l.b16 %v334
    %v699 = vunpack.c.h.b16 %v334
    %v700 = vunpack.c.l.b16 %v335
    %v701 = vunpack.c.h.b16 %v335
    %v702 = vunpack.c.l.b16 %v336
    %v703 = vunpack.c.h.b16 %v336
    %v704 = vunpack.c.l.b16 %v337
    %v705 = vunpack.c.h.b16 %v337
    %v706 = vunpack.c.l.b16 %v338
    %v707 = vunpack.c.h.b16 %v338
    %v708 = vunpack.c.l.b16 %v339
    %v709 = vunpack.c.h.b16 %v339
    %v710 = vunpack.c.l.b16 %v340
    %v711 = vunpack.c.h.b16 %v340
    %v712 = vunpack.c.l.b16 %v341
    %v713 = vunpack.c.h.b16 %v341
    %v714 = vunpack.c.l.b16 %v342
    %v715 = vunpack.c.h.b16 %v342
    %v716 = vunpack.c.l.b16 %v343
    %v717 = vunpack.c.h.b16 %v343
    %v718 = vunpack.c.l.b16 %v344
    %v719 = vunpack.c.h.b16 %v344
    %v720 = vunpack.c.l.b16 %v345
    %v721 = vunpack.c.h.b16 %v345
    %v722 = vunpack.c.l.b16 %v346
    %v723 = vunpack.c.h.b16 %v346
    %v724 = vunpack.c.l.b16 %v347
    %v725 = vunpack.c.h.b16 %v347
    %v726 = vunpack.c.l.b16 %v348
    %v727 = vunpack.c.h.b16 %v348
    %v728 = vunpack.c.l.b16 %v349
    %v729 = vunpack.c.h.b16 %v349
    %v730 = vunpack.c.l.b16 %v350
    %v731 = vunpack.c.h.b16 %v350
    %v732 = vunpack.c.l.b16 %v351
    %v733 = vunpack.c.h.b16 %v351
    %v734 = vunpack.c.l.b16 %v352
    %v735 = vunpack.c.h.b16 %v352
    %v736 = vunpack.c.l.b16 %v353
    %v737 = vunpack.c.h.b16 %v353
    %v738 = vunpack.c.l.b16 %v354
    %v739 = vunpack.c.h.b16 %v354
    %v740 = vunpack.c.l.b16 %v355
    %v741 = vunpack.c.h.b16 %v355
    %v742 = vunpack.c.l.b16 %v356
    %v743 = vunpack.c.h.b16 %v356
    %v744 = vunpack.c.l.b16 %v357
    %v745 = vunpack.c.h.b16 %v357
    %v746 = vunpack.c.l.b16 %v358
    %v747 = vunpack.c.h.b16 %v358
    %v748 = vunpack.c.l.b16 %v359
    %v749 = vunpack.c.h.b16 %v359
    %v750 = vunpack.c.l.b16 %v360
    %v751 = vunpack.c.h.b16 %v360
    %v752 = vunpack.c.l.b16 %v361
    %v753 = vunpack.c.h.b16 %v361
    %v754 = vunpack.c.l.b16 %v362
    %v755 = vunpack.c.h.b16 %v362
    %v756 = vunpack.c.l.b16 %v363
    %v757 = vunpack.c.h.b16 %v363
    %v758 = vunpack.c.l.b16 %v364
    %v759 = vunpack.c.h.b16 %v364
    %v760 = vunpack.c.l.b16 %v365
    %v761 = vunpack.c.h.b16 %v365
    %v762 = vunpack.c.l.b16 %v366
    %v763 = vunpack.c.h.b16 %v366
    %v764 = vunpack.c.l.b16 %v367
    %v765 = vunpack.c.h.b16 %v367
    %v766 = vunpack.c.l.b16 %v368
    %v767 = vunpack.c.h.b16 %v368
    %v768 = vunpack.c.l.b16 %v369
    %v769 = vunpack.c.h.b16 %v369
    %v770 = vunpack.c.l.b16 %v370
    %v771 = vunpack.c.h.b16 %v370
    %v772 = vunpack.c.l.b16 %v371
    %v773 = vunpack.c.h.b16 %v371
    %v774 = vunpack.c.l.b16 %v372
    %v775 = vunpack.c.h.b16 %v372
    %v776 = vunpack.c.l.b16 %v373
    %v777 = vunpack.c.h.b16 %v373
    %v778 = vunpack.c.l.b16 %v374
    %v779 = vunpack.c.h.b16 %v374
    %v780 = vunpack.c.l.b16 %v375
    %v781 = vunpack.c.h.b16 %v375
    %v782 = vpack.c.b16 %v530, %v526
    %v783 = vpack.c.b16 %v531, %v527
    %v784 = vpack.c.b16 %v532, %v528
    %v785 = vpack.c.b16 %v533, %v529
    %v786 = vpack.c.b16 %v538, %v534
    %v787 = vpack.c.b16 %v539, %v535
    %v788 = vpack.c.b16 %v540, %v536
    %v789 = vpack.c.b16 %v541, %v537
    %v790 = vpack.c.b16 %v546, %v542
    %v791 = vpack.c.b16 %v547, %v543
    %v792 = vpack.c.b16 %v548, %v544
    %v793 = vpack.c.b16 %v549, %v545
    %v794 = vpack.c.b16 %v554, %v550
    %v795 = vpack.c.b16 %v555, %v551
    %v796 = vpack.c.b16 %v556, %v552
    %v797 = vpack.c.b16 %v557, %v553
    %v798 = vpack.c.b16 %v562, %v558
    %v799 = vpack.c.b16 %v563, %v559
    %v800 = vpack.c.b16 %v564, %v560
    %v801 = vpack.c.b16 %v565, %v561
    %v802 = vpack.c.b16 %v570, %v566
    %v803 = vpack.c.b16 %v571, %v567
    %v804 = vpack.c.b16 %v572, %v568
    %v805 = vpack.c.b16 %v573, %v569
    %v806 = vpack.c.b16 %v578, %v574
    %v807 = vpack.c.b16 %v579, %v575
    %v808 = vpack.c.b16 %v580, %v576
    %v809 = vpack.c.b16 %v581, %v577
    %v810 = vpack.c.b16 %v586, %v582
    %v811 = vpack.c.b16 %v587, %v583
    %v812 = vpack.c.b16 %v588, %v584
    %v813 = vpack.c.b16 %v589, %v585
    %v814 = vpack.c.b16 %v594, %v590
    %v815 = vpack.c.b16 %v595, %v591
    %v816 = vpack.c.b16 %v596, %v592
    %v817 = vpack.c.b16 %v597, %v593
    %v818 = vpack.c.b16 %v602, %v598
    %v819 = vpack.c.b16 %v603, %v599
    %v820 = vpack.c.b16 %v604, %v600
    %v821 = vpack.c.b16 %v605, %v601
    %v822 = vpack.c.b16 %v610, %v606
    %v823 = vpack.c.b16 %v611, %v607
    %v824 = vpack.c.b16 %v612, %v608
    %v825 = vpack.c.b16 %v613, %v609
    %v826 = vpack.c.b16 %v618, %v614
    %v827 = vpack.c.b16 %v619, %v615
    %v828 = vpack.c.b16 %v620, %v616
    %v829 = vpack.c.b16 %v621, %v617
    %v830 = vpack.c.b16 %v626, %v622
    %v831 = vpack.c.b16 %v627, %v623
    %v832 = vpack.c.b16 %v628, %v624
    %v833 = vpack.c.b16 %v629, %v625
    %v834 = vpack.c.b16 %v634, %v630
    %v835 = vpack.c.b16 %v635, %v631
    %v836 = vpack.c.b16 %v636, %v632
    %v837 = vpack.c.b16 %v637, %v633
    %v838 = vpack.c.b16 %v642, %v638
    %v839 = vpack.c.b16 %v643, %v639
    %v840 = vpack.c.b16 %v644, %v640
    %v841 = vpack.c.b16 %v645, %v641
    %v842 = vpack.c.b16 %v650, %v646
    %v843 = vpack.c.b16 %v651, %v647
    %v844 = vpack.c.b16 %v652, %v648
    %v845 = vpack.c.b16 %v653, %v649
    %v846 = vpack.c.b16 %v658, %v654
    %v847 = vpack.c.b16 %v659, %v655
    %v848 = vpack.c.b16 %v660, %v656
    %v849 = vpack.c.b16 %v661, %v657
    %v850 = vpack.c.b16 %v666, %v662
    %v851 = vpack.c.b16 %v667, %v663
    %v852 = vpack.c.b16 %v668, %v664
    %v853 = vpack.c.b16 %v669, %v665
    %v854 = vpack.c.b16 %v674, %v670
    %v855 = vpack.c.b16 %v675, %v671
    %v856 = vpack.c.b16 %v676, %v672
    %v857 = vpack.c.b16 %v677, %v673
    %v858 = vpack.c.b16 %v682, %v678
    %v859 = vpack.c.b16 %v683, %v679
    %v860 = vpack.c.b16 %v684, %v680
    %v861 = vpack.c.b16 %v685, %v681
    %v862 = vpack.c.b16 %v690, %v686
    %v863 = vpack.c.b16 %v691, %v687
    %v864 = vpack.c.b16 %v692, %v688
    %v865 = vpack.c.b16 %v693, %v689
    %v866 = vpack.c.b16 %v698, %v694
    %v867 = vpack.c.b16 %v699, %v695
    %v868 = vpack.c.b16 %v700, %v696
    %v869 = vpack.c.b16 %v701, %v697
    %v870 = vpack.c.b16 %v706, %v702
    %v871 = vpack.c.b16 %v707, %v703
    %v872 = vpack.c.b16 %v708, %v704
    %v873 = vpack.c.b16 %v709, %v705
    %v874 = vpack.c.b16 %v714, %v710
    %v875 = vpack.c.b16 %v715, %v711
    %v876 = vpack.c.b16 %v716, %v712
    %v877 = vpack.c.b16 %v717, %v713
    %v878 = vpack.c.b16 %v722, %v718
    %v879 = vpack.c.b16 %v723, %v719
    %v880 = vpack.c.b16 %v724, %v720
    %v881 = vpack.c.b16 %v725, %v721
    %v882 = vpack.c.b16 %v730, %v726
    %v883 = vpack.c.b16 %v731, %v727
    %v884 = vpack.c.b16 %v732, %v728
    %v885 = vpack.c.b16 %v733, %v729
    %v886 = vpack.c.b16 %v738, %v734
    %v887 = vpack.c.b16 %v739, %v735
    %v888 = vpack.c.b16 %v740, %v736
    %v889 = vpack.c.b16 %v741, %v737
    %v890 = vpack.c.b16 %v746, %v742
    %v891 = vpack.c.b16 %v747, %v743
    %v892 = vpack.c.b16 %v748, %v744
    %v893 = vpack.c.b16 %v749, %v745
    %v894 = vpack.c.b16 %v754, %v750
    %v895 = vpack.c.b16 %v755, %v751
    %v896 = vpack.c.b16 %v756, %v752
    %v897 = vpack.c.b16 %v757, %v753
    %v898 = vpack.c.b16 %v762, %v758
    %v899 = vpack.c.b16 %v763, %v759
    %v900 = vpack.c.b16 %v764, %v760
    %v901 = vpack.c.b16 %v765, %v761
    %v902 = vpack.c.b16 %v770, %v766
    %v903 = vpack.c.b16 %v771, %v767
    %v904 = vpack.c.b16 %v772, %v768
    %v905 = vpack.c.b16 %v773, %v769
    %v906 = vpack.c.b16 %v778, %v774
    %v907 = vpack.c.b16 %v779, %v775
    %v908 = vpack.c.b16 %v780, %v776
    %v909 = vpack.c.b16 %v781, %v777
    %1038 = vmatprep.subr.bf16.mxu0 %v811
    %1039 = vmatpush1.bf16.msra.mxu0 %v810
    %1040 = vmatprep.subr.bf16.mxu0 %v807
    %1041 = vmatpush1.bf16.msra.mxu0 %v806
    %1042 = vmatprep.subr.bf16.mxu0 %v803
    %1043 = vmatpush1.bf16.msra.mxu0 %v802
    %1044 = vmatprep.subr.bf16.mxu0 %v799
    %1045 = vmatpush1.bf16.msra.mxu0 %v798
    %1046 = vmatprep.subr.bf16.mxu0 %v795
    %1047 = vmatpush1.bf16.msra.mxu0 %v794
    %1048 = vmatprep.subr.bf16.mxu0 %v791
    %1049 = vmatpush1.bf16.msra.mxu0 %v790
    %1050 = vmatprep.subr.bf16.mxu0 %v787
    %1051 = vmatpush1.bf16.msra.mxu0 %v786
    %1052 = vmatprep.subr.bf16.mxu0 %v783
    %1053 = vmatpush1.bf16.msra.mxu0 %v782
    %1054 = vmatprep.subr.bf16.mxu0 %v843
    %1055 = vmatpush2.bf16.msra.mxu0 %v842
    %1056 = vmatprep.subr.bf16.mxu0 %v839
    %1057 = vmatpush2.bf16.msra.mxu0 %v838
    %1058 = vmatprep.subr.bf16.mxu0 %v835
    %1059 = vmatpush2.bf16.msra.mxu0 %v834
    %1060 = vmatprep.subr.bf16.mxu0 %v831
    %1061 = vmatpush2.bf16.msra.mxu0 %v830
    %1062 = vmatprep.subr.bf16.mxu0 %v827
    %1063 = vmatpush2.bf16.msra.mxu0 %v826
    %1064 = vmatprep.subr.bf16.mxu0 %v823
    %1065 = vmatpush2.bf16.msra.mxu0 %v822
    %1066 = vmatprep.subr.bf16.mxu0 %v819
    %1067 = vmatpush2.bf16.msra.mxu0 %v818
    %1068 = vmatprep.subr.bf16.mxu0 %v815
    %1069 = vmatpush2.bf16.msra.mxu0 %v814
    %1070 = vmatprep.mubr.bf16.mxu0 %v245
    %1071 = vmatmul.mubr.bf16.gmra.mxu0 %v244
    %v1072 = vpop.f32.mrf.mxu0
    %v1073 = vadd.f32 %v381, %v1072
    %v1074 = vpop.f32.mrf.mxu0
    %v1075 = vadd.f32 %v385, %v1074
    %v1076 = vpop.f32.mrf.mxu0
    %v1077 = vpop.f32.mrf.mxu0
    %1078 = vdwg.mxu0
    %1079 = vmatprep.subr.bf16.mxu0 %v875
    %1080 = vmatpush1.bf16.msra.mxu0 %v874
    %1081 = vmatprep.subr.bf16.mxu0 %v871
    %1082 = vmatpush1.bf16.msra.mxu0 %v870
    %1083 = vmatprep.subr.bf16.mxu0 %v867
    %1084 = vmatpush1.bf16.msra.mxu0 %v866
    %1085 = vmatprep.subr.bf16.mxu0 %v863
    %1086 = vmatpush1.bf16.msra.mxu0 %v862
    %1087 = vmatprep.subr.bf16.mxu0 %v859
    %1088 = vmatpush1.bf16.msra.mxu0 %v858
    %1089 = vmatprep.subr.bf16.mxu0 %v855
    %1090 = vmatpush1.bf16.msra.mxu0 %v854
    %1091 = vmatprep.subr.bf16.mxu0 %v851
    %1092 = vmatpush1.bf16.msra.mxu0 %v850
    %1093 = vmatprep.subr.bf16.mxu0 %v847
    %1094 = vmatpush1.bf16.msra.mxu0 %v846
    %1095 = vmatprep.subr.bf16.mxu0 %v907
    %1096 = vmatpush2.bf16.msra.mxu0 %v906
    %1097 = vmatprep.subr.bf16.mxu0 %v903
    %1098 = vmatpush2.bf16.msra.mxu0 %v902
    %1099 = vmatprep.subr.bf16.mxu0 %v899
    %1100 = vmatpush2.bf16.msra.mxu0 %v898
    %1101 = vmatprep.subr.bf16.mxu0 %v895
    %1102 = vmatpush2.bf16.msra.mxu0 %v894
    %1103 = vmatprep.subr.bf16.mxu0 %v891
    %1104 = vmatpush2.bf16.msra.mxu0 %v890
    %1105 = vmatprep.subr.bf16.mxu0 %v887
    %1106 = vmatpush2.bf16.msra.mxu0 %v886
    %1107 = vmatprep.subr.bf16.mxu0 %v883
    %1108 = vmatpush2.bf16.msra.mxu0 %v882
    %1109 = vmatprep.subr.bf16.mxu0 %v879
    %1110 = vmatpush2.bf16.msra.mxu0 %v878
    %1111 = vmatprep.mubr.bf16.mxu0 %v247
    %1112 = vmatmul.mubr.bf16.gmra.mxu0 %v246
    %v1113 = vpop.f32.mrf.mxu0
    %v1114 = vadd.f32 %v1073, %v1113
    %v1115 = vpop.f32.mrf.mxu0
    %v1116 = vadd.f32 %v1075, %v1115
    %v1117 = vpop.f32.mrf.mxu0
    %v1118 = vpop.f32.mrf.mxu0
    %1119 = vdwg.mxu0
    %1120 = vmatprep.subr.bf16.mxu0 %v813
    %1121 = vmatpush1.bf16.msra.mxu0 %v812
    %1122 = vmatprep.subr.bf16.mxu0 %v809
    %1123 = vmatpush1.bf16.msra.mxu0 %v808
    %1124 = vmatprep.subr.bf16.mxu0 %v805
    %1125 = vmatpush1.bf16.msra.mxu0 %v804
    %1126 = vmatprep.subr.bf16.mxu0 %v801
    %1127 = vmatpush1.bf16.msra.mxu0 %v800
    %1128 = vmatprep.subr.bf16.mxu0 %v797
    %1129 = vmatpush1.bf16.msra.mxu0 %v796
    %1130 = vmatprep.subr.bf16.mxu0 %v793
    %1131 = vmatpush1.bf16.msra.mxu0 %v792
    %1132 = vmatprep.subr.bf16.mxu0 %v789
    %1133 = vmatpush1.bf16.msra.mxu0 %v788
    %1134 = vmatprep.subr.bf16.mxu0 %v785
    %1135 = vmatpush1.bf16.msra.mxu0 %v784
    %1136 = vmatprep.subr.bf16.mxu0 %v845
    %1137 = vmatpush2.bf16.msra.mxu0 %v844
    %1138 = vmatprep.subr.bf16.mxu0 %v841
    %1139 = vmatpush2.bf16.msra.mxu0 %v840
    %1140 = vmatprep.subr.bf16.mxu0 %v837
    %1141 = vmatpush2.bf16.msra.mxu0 %v836
    %1142 = vmatprep.subr.bf16.mxu0 %v833
    %1143 = vmatpush2.bf16.msra.mxu0 %v832
    %1144 = vmatprep.subr.bf16.mxu0 %v829
    %1145 = vmatpush2.bf16.msra.mxu0 %v828
    %1146 = vmatprep.subr.bf16.mxu0 %v825
    %1147 = vmatpush2.bf16.msra.mxu0 %v824
    %1148 = vmatprep.subr.bf16.mxu0 %v821
    %1149 = vmatpush2.bf16.msra.mxu0 %v820
    %1150 = vmatprep.subr.bf16.mxu0 %v817
    %1151 = vmatpush2.bf16.msra.mxu0 %v816
    %1152 = vmatprep.mubr.bf16.mxu0 %v245
    %1153 = vmatmul.mubr.bf16.gmra.mxu0 %v244
    %v1154 = vpop.f32.mrf.mxu0
    %v1155 = vadd.f32 %v389, %v1154
    %v1156 = vpop.f32.mrf.mxu0
    %v1157 = vadd.f32 %v393, %v1156
    %v1158 = vpop.f32.mrf.mxu0
    %v1159 = vpop.f32.mrf.mxu0
    %1160 = vdwg.mxu0
    %1161 = vmatprep.subr.bf16.mxu0 %v877
    %1162 = vmatpush1.bf16.msra.mxu0 %v876
    %1163 = vmatprep.subr.bf16.mxu0 %v873
    %1164 = vmatpush1.bf16.msra.mxu0 %v872
    %1165 = vmatprep.subr.bf16.mxu0 %v869
    %1166 = vmatpush1.bf16.msra.mxu0 %v868
    %1167 = vmatprep.subr.bf16.mxu0 %v865
    %1168 = vmatpush1.bf16.msra.mxu0 %v864
    %1169 = vmatprep.subr.bf16.mxu0 %v861
    %1170 = vmatpush1.bf16.msra.mxu0 %v860
    %1171 = vmatprep.subr.bf16.mxu0 %v857
    %1172 = vmatpush1.bf16.msra.mxu0 %v856
    %1173 = vmatprep.subr.bf16.mxu0 %v853
    %1174 = vmatpush1.bf16.msra.mxu0 %v852
    %1175 = vmatprep.subr.bf16.mxu0 %v849
    %1176 = vmatpush1.bf16.msra.mxu0 %v848
    %1177 = vmatprep.subr.bf16.mxu0 %v909
    %1178 = vmatpush2.bf16.msra.mxu0 %v908
    %1179 = vmatprep.subr.bf16.mxu0 %v905
    %1180 = vmatpush2.bf16.msra.mxu0 %v904
    %1181 = vmatprep.subr.bf16.mxu0 %v901
    %1182 = vmatpush2.bf16.msra.mxu0 %v900
    %1183 = vmatprep.subr.bf16.mxu0 %v897
    %1184 = vmatpush2.bf16.msra.mxu0 %v896
    %1185 = vmatprep.subr.bf16.mxu0 %v893
    %1186 = vmatpush2.bf16.msra.mxu0 %v892
    %1187 = vmatprep.subr.bf16.mxu0 %v889
    %1188 = vmatpush2.bf16.msra.mxu0 %v888
    %1189 = vmatprep.subr.bf16.mxu0 %v885
    %1190 = vmatpush2.bf16.msra.mxu0 %v884
    %1191 = vmatprep.subr.bf16.mxu0 %v881
    %1192 = vmatpush2.bf16.msra.mxu0 %v880
    %1193 = vmatprep.mubr.bf16.mxu0 %v247
    %1194 = vmatmul.mubr.bf16.gmra.mxu0 %v246
    %v1195 = vpop.f32.mrf.mxu0
    %v1196 = vadd.f32 %v1155, %v1195
    %v1197 = vpop.f32.mrf.mxu0
    %v1198 = vadd.f32 %v1157, %v1197
    %v1199 = vpop.f32.mrf.mxu0
    %v1200 = vpop.f32.mrf.mxu0
    %1201 = vdwg.mxu0
    %v1202 = vadd.f32 %v1114, %v193
    %v1203 = vadd.f32 %v1116, %v195
    %v1204 = vadd.f32 %v1196, %v234
    %v1205 = vadd.f32 %v1198, %v236
    %v1206 = vmax.f32 %v1202, 0.0
    %v1207 = vmax.f32 %v1203, 0.0
    %v1208 = vmax.f32 %v1204, 0.0
    %v1209 = vmax.f32 %v1205, 0.0
    %v1210 = vpack.c.bf16 %v1206, %v1206
    %v1211 = vpack.c.bf16 %v1207, %v1207
    %v1212 = vpack.c.bf16 %v1208, %v1208
    %v1213 = vpack.c.bf16 %v1209, %v1209
    %v1214 = vld [vmem:[#allocation6] sm:$0xff]
    %v1215 = vld [vmem:[#allocation6 + $0x8] sm:$0xff]
    %v1216 = vld [vmem:[#allocation6 + $0x10] sm:$0xff]
    %v1217 = vld [vmem:[#allocation6 + $0x18] sm:$0xff]
    %v1218 = vld [vmem:[#allocation6 + $0x20] sm:$0xff]
    %v1219 = vld [vmem:[#allocation6 + $0x28] sm:$0xff]
    %v1220 = vld [vmem:[#allocation6 + $0x30] sm:$0xff]
    %v1221 = vld [vmem:[#allocation6 + $0x38] sm:$0xff]
    %v1222 = vld [vmem:[#allocation6 + $0x40] sm:$0xff]
    %v1223 = vld [vmem:[#allocation6 + $0x48] sm:$0xff]
    %v1224 = vld [vmem:[#allocation6 + $0x50] sm:$0xff]
    %v1225 = vld [vmem:[#allocation6 + $0x58] sm:$0xff]
    %v1226 = vld [vmem:[#allocation6 + $0x60] sm:$0xff]
    %v1227 = vld [vmem:[#allocation6 + $0x68] sm:$0xff]
    %v1228 = vld [vmem:[#allocation6 + $0x70] sm:$0xff]
    %v1229 = vld [vmem:[#allocation6 + $0x78] sm:$0xff]
    %v1230 = vld [vmem:[#allocation6 + $0x80] sm:$0xff]
    %v1231 = vld [vmem:[#allocation6 + $0x88] sm:$0xff]
    %v1232 = vld [vmem:[#allocation6 + $0x90] sm:$0xff]
    %v1233 = vld [vmem:[#allocation6 + $0x98] sm:$0xff]
    %v1234 = vld [vmem:[#allocation6 + $0xa0] sm:$0xff]
    %v1235 = vld [vmem:[#allocation6 + $0xa8] sm:$0xff]
    %v1236 = vld [vmem:[#allocation6 + $0xb0] sm:$0xff]
    %v1237 = vld [vmem:[#allocation6 + $0xb8] sm:$0xff]
    %v1238 = vld [vmem:[#allocation6 + $0xc0] sm:$0xff]
    %v1239 = vld [vmem:[#allocation6 + $0xc8] sm:$0xff]
    %v1240 = vld [vmem:[#allocation6 + $0xd0] sm:$0xff]
    %v1241 = vld [vmem:[#allocation6 + $0xd8] sm:$0xff]
    %v1242 = vld [vmem:[#allocation6 + $0xe0] sm:$0xff]
    %v1243 = vld [vmem:[#allocation6 + $0xe8] sm:$0xff]
    %v1244 = vld [vmem:[#allocation6 + $0xf0] sm:$0xff]
    %v1245 = vld [vmem:[#allocation6 + $0xf8] sm:$0xff]
    %v1246 = vld [vmem:[#allocation6 + $0x100] sm:$0xff]
    %v1247 = vld [vmem:[#allocation6 + $0x108] sm:$0xff]
    %v1248 = vld [vmem:[#allocation6 + $0x110] sm:$0xff]
    %v1249 = vld [vmem:[#allocation6 + $0x118] sm:$0xff]
    %v1250 = vld [vmem:[#allocation6 + $0x120] sm:$0xff]
    %v1251 = vld [vmem:[#allocation6 + $0x128] sm:$0xff]
    %v1252 = vld [vmem:[#allocation6 + $0x130] sm:$0xff]
    %v1253 = vld [vmem:[#allocation6 + $0x138] sm:$0xff]
    %v1254 = vld [vmem:[#allocation6 + $0x140] sm:$0xff]
    %v1255 = vld [vmem:[#allocation6 + $0x148] sm:$0xff]
    %v1256 = vld [vmem:[#allocation6 + $0x150] sm:$0xff]
    %v1257 = vld [vmem:[#allocation6 + $0x158] sm:$0xff]
    %v1258 = vld [vmem:[#allocation6 + $0x160] sm:$0xff]
    %v1259 = vld [vmem:[#allocation6 + $0x168] sm:$0xff]
    %v1260 = vld [vmem:[#allocation6 + $0x170] sm:$0xff]
    %v1261 = vld [vmem:[#allocation6 + $0x178] sm:$0xff]
    %v1262 = vld [vmem:[#allocation6 + $0x180] sm:$0xff]
    %v1263 = vld [vmem:[#allocation6 + $0x188] sm:$0xff]
    %v1264 = vld [vmem:[#allocation6 + $0x190] sm:$0xff]
    %v1265 = vld [vmem:[#allocation6 + $0x198] sm:$0xff]
    %v1266 = vld [vmem:[#allocation6 + $0x1a0] sm:$0xff]
    %v1267 = vld [vmem:[#allocation6 + $0x1a8] sm:$0xff]
    %v1268 = vld [vmem:[#allocation6 + $0x1b0] sm:$0xff]
    %v1269 = vld [vmem:[#allocation6 + $0x1b8] sm:$0xff]
    %v1270 = vld [vmem:[#allocation6 + $0x1c0] sm:$0xff]
    %v1271 = vld [vmem:[#allocation6 + $0x1c8] sm:$0xff]
    %v1272 = vld [vmem:[#allocation6 + $0x1d0] sm:$0xff]
    %v1273 = vld [vmem:[#allocation6 + $0x1d8] sm:$0xff]
    %v1274 = vld [vmem:[#allocation6 + $0x1e0] sm:$0xff]
    %v1275 = vld [vmem:[#allocation6 + $0x1e8] sm:$0xff]
    %v1276 = vld [vmem:[#allocation6 + $0x1f0] sm:$0xff]
    %v1277 = vld [vmem:[#allocation6 + $0x1f8] sm:$0xff]
    %v1278 = vld [vmem:[#allocation6 + $0x200] sm:$0xff]
    %v1279 = vld [vmem:[#allocation6 + $0x208] sm:$0xff]
    %v1280 = vld [vmem:[#allocation6 + $0x210] sm:$0xff]
    %v1281 = vld [vmem:[#allocation6 + $0x218] sm:$0xff]
    %v1282 = vld [vmem:[#allocation6 + $0x220] sm:$0xff]
    %v1283 = vld [vmem:[#allocation6 + $0x228] sm:$0xff]
    %v1284 = vld [vmem:[#allocation6 + $0x230] sm:$0xff]
    %v1285 = vld [vmem:[#allocation6 + $0x238] sm:$0xff]
    %v1286 = vld [vmem:[#allocation6 + $0x240] sm:$0xff]
    %v1287 = vld [vmem:[#allocation6 + $0x248] sm:$0xff]
    %v1288 = vld [vmem:[#allocation6 + $0x250] sm:$0xff]
    %v1289 = vld [vmem:[#allocation6 + $0x258] sm:$0xff]
    %v1290 = vld [vmem:[#allocation6 + $0x260] sm:$0xff]
    %v1291 = vld [vmem:[#allocation6 + $0x268] sm:$0xff]
    %v1292 = vld [vmem:[#allocation6 + $0x270] sm:$0xff]
    %v1293 = vld [vmem:[#allocation6 + $0x278] sm:$0xff]
    %v1294 = vld [vmem:[#allocation6 + $0x280] sm:$0xff]
    %v1295 = vld [vmem:[#allocation6 + $0x288] sm:$0xff]
    %v1296 = vld [vmem:[#allocation6 + $0x290] sm:$0xff]
    %v1297 = vld [vmem:[#allocation6 + $0x298] sm:$0xff]
    %v1298 = vld [vmem:[#allocation6 + $0x2a0] sm:$0xff]
    %v1299 = vld [vmem:[#allocation6 + $0x2a8] sm:$0xff]
    %v1300 = vld [vmem:[#allocation6 + $0x2b0] sm:$0xff]
    %v1301 = vld [vmem:[#allocation6 + $0x2b8] sm:$0xff]
    %v1302 = vld [vmem:[#allocation6 + $0x2c0] sm:$0xff]
    %v1303 = vld [vmem:[#allocation6 + $0x2c8] sm:$0xff]
    %v1304 = vld [vmem:[#allocation6 + $0x2d0] sm:$0xff]
    %v1305 = vld [vmem:[#allocation6 + $0x2d8] sm:$0xff]
    %v1306 = vld [vmem:[#allocation6 + $0x2e0] sm:$0xff]
    %v1307 = vld [vmem:[#allocation6 + $0x2e8] sm:$0xff]
    %v1308 = vld [vmem:[#allocation6 + $0x2f0] sm:$0xff]
    %v1309 = vld [vmem:[#allocation6 + $0x2f8] sm:$0xff]
    %v1310 = vld [vmem:[#allocation6 + $0x300] sm:$0xff]
    %v1311 = vld [vmem:[#allocation6 + $0x308] sm:$0xff]
    %v1312 = vld [vmem:[#allocation6 + $0x310] sm:$0xff]
    %v1313 = vld [vmem:[#allocation6 + $0x318] sm:$0xff]
    %v1314 = vld [vmem:[#allocation6 + $0x320] sm:$0xff]
    %v1315 = vld [vmem:[#allocation6 + $0x328] sm:$0xff]
    %v1316 = vld [vmem:[#allocation6 + $0x330] sm:$0xff]
    %v1317 = vld [vmem:[#allocation6 + $0x338] sm:$0xff]
    %v1318 = vld [vmem:[#allocation6 + $0x340] sm:$0xff]
    %v1319 = vld [vmem:[#allocation6 + $0x348] sm:$0xff]
    %v1320 = vld [vmem:[#allocation6 + $0x350] sm:$0xff]
    %v1321 = vld [vmem:[#allocation6 + $0x358] sm:$0xff]
    %v1322 = vld [vmem:[#allocation6 + $0x360] sm:$0xff]
    %v1323 = vld [vmem:[#allocation6 + $0x368] sm:$0xff]
    %v1324 = vld [vmem:[#allocation6 + $0x370] sm:$0xff]
    %v1325 = vld [vmem:[#allocation6 + $0x378] sm:$0xff]
    %v1326 = vld [vmem:[#allocation6 + $0x380] sm:$0xff]
    %v1327 = vld [vmem:[#allocation6 + $0x388] sm:$0xff]
    %v1328 = vld [vmem:[#allocation6 + $0x390] sm:$0xff]
    %v1329 = vld [vmem:[#allocation6 + $0x398] sm:$0xff]
    %v1330 = vld [vmem:[#allocation6 + $0x3a0] sm:$0xff]
    %v1331 = vld [vmem:[#allocation6 + $0x3a8] sm:$0xff]
    %v1332 = vld [vmem:[#allocation6 + $0x3b0] sm:$0xff]
    %v1333 = vld [vmem:[#allocation6 + $0x3b8] sm:$0xff]
    %v1334 = vld [vmem:[#allocation6 + $0x3c0] sm:$0xff]
    %v1335 = vld [vmem:[#allocation6 + $0x3c8] sm:$0xff]
    %v1336 = vld [vmem:[#allocation6 + $0x3d0] sm:$0xff]
    %v1337 = vld [vmem:[#allocation6 + $0x3d8] sm:$0xff]
    %v1338 = vld [vmem:[#allocation6 + $0x3e0] sm:$0xff]
    %v1339 = vld [vmem:[#allocation6 + $0x3e8] sm:$0xff]
    %v1340 = vld [vmem:[#allocation6 + $0x3f0] sm:$0xff]
    %v1341 = vld [vmem:[#allocation6 + $0x3f8] sm:$0xff]
    %v1342 = vld [vmem:[%s6] sm:$0xf]
    %v1344 = vlaneseq
    %v1345 = vshrl.u32 %v1344, 7
    %v1346 = vsub.s32 0, %v1345
    %v1347 = vrot.slane %v1342, %v1346
    %v1348 = vlaneseq
    %v1349 = vshrl.u32 %v1348, 7
    %v1350 = vsub.s32 1, %v1349
    %v1351 = vrot.slane %v1342, %v1350
    %v1352 = vlaneseq
    %v1353 = vshrl.u32 %v1352, 7
    %v1354 = vsub.s32 2, %v1353
    %v1355 = vrot.slane %v1342, %v1354
    %v1356 = vlaneseq
    %v1357 = vshrl.u32 %v1356, 7
    %v1358 = vsub.s32 3, %v1357
    %v1359 = vrot.slane %v1342, %v1358
    %v1492 = vunpack.c.l.b16 %v1214
    %v1493 = vunpack.c.h.b16 %v1214
    %v1494 = vunpack.c.l.b16 %v1215
    %v1495 = vunpack.c.h.b16 %v1215
    %v1496 = vunpack.c.l.b16 %v1216
    %v1497 = vunpack.c.h.b16 %v1216
    %v1498 = vunpack.c.l.b16 %v1217
    %v1499 = vunpack.c.h.b16 %v1217
    %v1500 = vunpack.c.l.b16 %v1218
    %v1501 = vunpack.c.h.b16 %v1218
    %v1502 = vunpack.c.l.b16 %v1219
    %v1503 = vunpack.c.h.b16 %v1219
    %v1504 = vunpack.c.l.b16 %v1220
    %v1505 = vunpack.c.h.b16 %v1220
    %v1506 = vunpack.c.l.b16 %v1221
    %v1507 = vunpack.c.h.b16 %v1221
    %v1508 = vunpack.c.l.b16 %v1222
    %v1509 = vunpack.c.h.b16 %v1222
    %v1510 = vunpack.c.l.b16 %v1223
    %v1511 = vunpack.c.h.b16 %v1223
    %v1512 = vunpack.c.l.b16 %v1224
    %v1513 = vunpack.c.h.b16 %v1224
    %v1514 = vunpack.c.l.b16 %v1225
    %v1515 = vunpack.c.h.b16 %v1225
    %v1516 = vunpack.c.l.b16 %v1226
    %v1517 = vunpack.c.h.b16 %v1226
    %v1518 = vunpack.c.l.b16 %v1227
    %v1519 = vunpack.c.h.b16 %v1227
    %v1520 = vunpack.c.l.b16 %v1228
    %v1521 = vunpack.c.h.b16 %v1228
    %v1522 = vunpack.c.l.b16 %v1229
    %v1523 = vunpack.c.h.b16 %v1229
    %v1524 = vunpack.c.l.b16 %v1230
    %v1525 = vunpack.c.h.b16 %v1230
    %v1526 = vunpack.c.l.b16 %v1231
    %v1527 = vunpack.c.h.b16 %v1231
    %v1528 = vunpack.c.l.b16 %v1232
    %v1529 = vunpack.c.h.b16 %v1232
    %v1530 = vunpack.c.l.b16 %v1233
    %v1531 = vunpack.c.h.b16 %v1233
    %v1532 = vunpack.c.l.b16 %v1234
    %v1533 = vunpack.c.h.b16 %v1234
    %v1534 = vunpack.c.l.b16 %v1235
    %v1535 = vunpack.c.h.b16 %v1235
    %v1536 = vunpack.c.l.b16 %v1236
    %v1537 = vunpack.c.h.b16 %v1236
    %v1538 = vunpack.c.l.b16 %v1237
    %v1539 = vunpack.c.h.b16 %v1237
    %v1540 = vunpack.c.l.b16 %v1238
    %v1541 = vunpack.c.h.b16 %v1238
    %v1542 = vunpack.c.l.b16 %v1239
    %v1543 = vunpack.c.h.b16 %v1239
    %v1544 = vunpack.c.l.b16 %v1240
    %v1545 = vunpack.c.h.b16 %v1240
    %v1546 = vunpack.c.l.b16 %v1241
    %v1547 = vunpack.c.h.b16 %v1241
    %v1548 = vunpack.c.l.b16 %v1242
    %v1549 = vunpack.c.h.b16 %v1242
    %v1550 = vunpack.c.l.b16 %v1243
    %v1551 = vunpack.c.h.b16 %v1243
    %v1552 = vunpack.c.l.b16 %v1244
    %v1553 = vunpack.c.h.b16 %v1244
    %v1554 = vunpack.c.l.b16 %v1245
    %v1555 = vunpack.c.h.b16 %v1245
    %v1556 = vunpack.c.l.b16 %v1246
    %v1557 = vunpack.c.h.b16 %v1246
    %v1558 = vunpack.c.l.b16 %v1247
    %v1559 = vunpack.c.h.b16 %v1247
    %v1560 = vunpack.c.l.b16 %v1248
    %v1561 = vunpack.c.h.b16 %v1248
    %v1562 = vunpack.c.l.b16 %v1249
    %v1563 = vunpack.c.h.b16 %v1249
    %v1564 = vunpack.c.l.b16 %v1250
    %v1565 = vunpack.c.h.b16 %v1250
    %v1566 = vunpack.c.l.b16 %v1251
    %v1567 = vunpack.c.h.b16 %v1251
    %v1568 = vunpack.c.l.b16 %v1252
    %v1569 = vunpack.c.h.b16 %v1252
    %v1570 = vunpack.c.l.b16 %v1253
    %v1571 = vunpack.c.h.b16 %v1253
    %v1572 = vunpack.c.l.b16 %v1254
    %v1573 = vunpack.c.h.b16 %v1254
    %v1574 = vunpack.c.l.b16 %v1255
    %v1575 = vunpack.c.h.b16 %v1255
    %v1576 = vunpack.c.l.b16 %v1256
    %v1577 = vunpack.c.h.b16 %v1256
    %v1578 = vunpack.c.l.b16 %v1257
    %v1579 = vunpack.c.h.b16 %v1257
    %v1580 = vunpack.c.l.b16 %v1258
    %v1581 = vunpack.c.h.b16 %v1258
    %v1582 = vunpack.c.l.b16 %v1259
    %v1583 = vunpack.c.h.b16 %v1259
    %v1584 = vunpack.c.l.b16 %v1260
    %v1585 = vunpack.c.h.b16 %v1260
    %v1586 = vunpack.c.l.b16 %v1261
    %v1587 = vunpack.c.h.b16 %v1261
    %v1588 = vunpack.c.l.b16 %v1262
    %v1589 = vunpack.c.h.b16 %v1262
    %v1590 = vunpack.c.l.b16 %v1263
    %v1591 = vunpack.c.h.b16 %v1263
    %v1592 = vunpack.c.l.b16 %v1264
    %v1593 = vunpack.c.h.b16 %v1264
    %v1594 = vunpack.c.l.b16 %v1265
    %v1595 = vunpack.c.h.b16 %v1265
    %v1596 = vunpack.c.l.b16 %v1266
    %v1597 = vunpack.c.h.b16 %v1266
    %v1598 = vunpack.c.l.b16 %v1267
    %v1599 = vunpack.c.h.b16 %v1267
    %v1600 = vunpack.c.l.b16 %v1268
    %v1601 = vunpack.c.h.b16 %v1268
    %v1602 = vunpack.c.l.b16 %v1269
    %v1603 = vunpack.c.h.b16 %v1269
    %v1604 = vunpack.c.l.b16 %v1270
    %v1605 = vunpack.c.h.b16 %v1270
    %v1606 = vunpack.c.l.b16 %v1271
    %v1607 = vunpack.c.h.b16 %v1271
    %v1608 = vunpack.c.l.b16 %v1272
    %v1609 = vunpack.c.h.b16 %v1272
    %v1610 = vunpack.c.l.b16 %v1273
    %v1611 = vunpack.c.h.b16 %v1273
    %v1612 = vunpack.c.l.b16 %v1274
    %v1613 = vunpack.c.h.b16 %v1274
    %v1614 = vunpack.c.l.b16 %v1275
    %v1615 = vunpack.c.h.b16 %v1275
    %v1616 = vunpack.c.l.b16 %v1276
    %v1617 = vunpack.c.h.b16 %v1276
    %v1618 = vunpack.c.l.b16 %v1277
    %v1619 = vunpack.c.h.b16 %v1277
    %v1620 = vunpack.c.l.b16 %v1278
    %v1621 = vunpack.c.h.b16 %v1278
    %v1622 = vunpack.c.l.b16 %v1279
    %v1623 = vunpack.c.h.b16 %v1279
    %v1624 = vunpack.c.l.b16 %v1280
    %v1625 = vunpack.c.h.b16 %v1280
    %v1626 = vunpack.c.l.b16 %v1281
    %v1627 = vunpack.c.h.b16 %v1281
    %v1628 = vunpack.c.l.b16 %v1282
    %v1629 = vunpack.c.h.b16 %v1282
    %v1630 = vunpack.c.l.b16 %v1283
    %v1631 = vunpack.c.h.b16 %v1283
    %v1632 = vunpack.c.l.b16 %v1284
    %v1633 = vunpack.c.h.b16 %v1284
    %v1634 = vunpack.c.l.b16 %v1285
    %v1635 = vunpack.c.h.b16 %v1285
    %v1636 = vunpack.c.l.b16 %v1286
    %v1637 = vunpack.c.h.b16 %v1286
    %v1638 = vunpack.c.l.b16 %v1287
    %v1639 = vunpack.c.h.b16 %v1287
    %v1640 = vunpack.c.l.b16 %v1288
    %v1641 = vunpack.c.h.b16 %v1288
    %v1642 = vunpack.c.l.b16 %v1289
    %v1643 = vunpack.c.h.b16 %v1289
    %v1644 = vunpack.c.l.b16 %v1290
    %v1645 = vunpack.c.h.b16 %v1290
    %v1646 = vunpack.c.l.b16 %v1291
    %v1647 = vunpack.c.h.b16 %v1291
    %v1648 = vunpack.c.l.b16 %v1292
    %v1649 = vunpack.c.h.b16 %v1292
    %v1650 = vunpack.c.l.b16 %v1293
    %v1651 = vunpack.c.h.b16 %v1293
    %v1652 = vunpack.c.l.b16 %v1294
    %v1653 = vunpack.c.h.b16 %v1294
    %v1654 = vunpack.c.l.b16 %v1295
    %v1655 = vunpack.c.h.b16 %v1295
    %v1656 = vunpack.c.l.b16 %v1296
    %v1657 = vunpack.c.h.b16 %v1296
    %v1658 = vunpack.c.l.b16 %v1297
    %v1659 = vunpack.c.h.b16 %v1297
    %v1660 = vunpack.c.l.b16 %v1298
    %v1661 = vunpack.c.h.b16 %v1298
    %v1662 = vunpack.c.l.b16 %v1299
    %v1663 = vunpack.c.h.b16 %v1299
    %v1664 = vunpack.c.l.b16 %v1300
    %v1665 = vunpack.c.h.b16 %v1300
    %v1666 = vunpack.c.l.b16 %v1301
    %v1667 = vunpack.c.h.b16 %v1301
    %v1668 = vunpack.c.l.b16 %v1302
    %v1669 = vunpack.c.h.b16 %v1302
    %v1670 = vunpack.c.l.b16 %v1303
    %v1671 = vunpack.c.h.b16 %v1303
    %v1672 = vunpack.c.l.b16 %v1304
    %v1673 = vunpack.c.h.b16 %v1304
    %v1674 = vunpack.c.l.b16 %v1305
    %v1675 = vunpack.c.h.b16 %v1305
    %v1676 = vunpack.c.l.b16 %v1306
    %v1677 = vunpack.c.h.b16 %v1306
    %v1678 = vunpack.c.l.b16 %v1307
    %v1679 = vunpack.c.h.b16 %v1307
    %v1680 = vunpack.c.l.b16 %v1308
    %v1681 = vunpack.c.h.b16 %v1308
    %v1682 = vunpack.c.l.b16 %v1309
    %v1683 = vunpack.c.h.b16 %v1309
    %v1684 = vunpack.c.l.b16 %v1310
    %v1685 = vunpack.c.h.b16 %v1310
    %v1686 = vunpack.c.l.b16 %v1311
    %v1687 = vunpack.c.h.b16 %v1311
    %v1688 = vunpack.c.l.b16 %v1312
    %v1689 = vunpack.c.h.b16 %v1312
    %v1690 = vunpack.c.l.b16 %v1313
    %v1691 = vunpack.c.h.b16 %v1313
    %v1692 = vunpack.c.l.b16 %v1314
    %v1693 = vunpack.c.h.b16 %v1314
    %v1694 = vunpack.c.l.b16 %v1315
    %v1695 = vunpack.c.h.b16 %v1315
    %v1696 = vunpack.c.l.b16 %v1316
    %v1697 = vunpack.c.h.b16 %v1316
    %v1698 = vunpack.c.l.b16 %v1317
    %v1699 = vunpack.c.h.b16 %v1317
    %v1700 = vunpack.c.l.b16 %v1318
    %v1701 = vunpack.c.h.b16 %v1318
    %v1702 = vunpack.c.l.b16 %v1319
    %v1703 = vunpack.c.h.b16 %v1319
    %v1704 = vunpack.c.l.b16 %v1320
    %v1705 = vunpack.c.h.b16 %v1320
    %v1706 = vunpack.c.l.b16 %v1321
    %v1707 = vunpack.c.h.b16 %v1321
    %v1708 = vunpack.c.l.b16 %v1322
    %v1709 = vunpack.c.h.b16 %v1322
    %v1710 = vunpack.c.l.b16 %v1323
    %v1711 = vunpack.c.h.b16 %v1323
    %v1712 = vunpack.c.l.b16 %v1324
    %v1713 = vunpack.c.h.b16 %v1324
    %v1714 = vunpack.c.l.b16 %v1325
    %v1715 = vunpack.c.h.b16 %v1325
    %v1716 = vunpack.c.l.b16 %v1326
    %v1717 = vunpack.c.h.b16 %v1326
    %v1718 = vunpack.c.l.b16 %v1327
    %v1719 = vunpack.c.h.b16 %v1327
    %v1720 = vunpack.c.l.b16 %v1328
    %v1721 = vunpack.c.h.b16 %v1328
    %v1722 = vunpack.c.l.b16 %v1329
    %v1723 = vunpack.c.h.b16 %v1329
    %v1724 = vunpack.c.l.b16 %v1330
    %v1725 = vunpack.c.h.b16 %v1330
    %v1726 = vunpack.c.l.b16 %v1331
    %v1727 = vunpack.c.h.b16 %v1331
    %v1728 = vunpack.c.l.b16 %v1332
    %v1729 = vunpack.c.h.b16 %v1332
    %v1730 = vunpack.c.l.b16 %v1333
    %v1731 = vunpack.c.h.b16 %v1333
    %v1732 = vunpack.c.l.b16 %v1334
    %v1733 = vunpack.c.h.b16 %v1334
    %v1734 = vunpack.c.l.b16 %v1335
    %v1735 = vunpack.c.h.b16 %v1335
    %v1736 = vunpack.c.l.b16 %v1336
    %v1737 = vunpack.c.h.b16 %v1336
    %v1738 = vunpack.c.l.b16 %v1337
    %v1739 = vunpack.c.h.b16 %v1337
    %v1740 = vunpack.c.l.b16 %v1338
    %v1741 = vunpack.c.h.b16 %v1338
    %v1742 = vunpack.c.l.b16 %v1339
    %v1743 = vunpack.c.h.b16 %v1339
    %v1744 = vunpack.c.l.b16 %v1340
    %v1745 = vunpack.c.h.b16 %v1340
    %v1746 = vunpack.c.l.b16 %v1341
    %v1747 = vunpack.c.h.b16 %v1341
    %v1748 = vpack.c.b16 %v1496, %v1492
    %v1749 = vpack.c.b16 %v1497, %v1493
    %v1750 = vpack.c.b16 %v1498, %v1494
    %v1751 = vpack.c.b16 %v1499, %v1495
    %v1752 = vpack.c.b16 %v1504, %v1500
    %v1753 = vpack.c.b16 %v1505, %v1501
    %v1754 = vpack.c.b16 %v1506, %v1502
    %v1755 = vpack.c.b16 %v1507, %v1503
    %v1756 = vpack.c.b16 %v1512, %v1508
    %v1757 = vpack.c.b16 %v1513, %v1509
    %v1758 = vpack.c.b16 %v1514, %v1510
    %v1759 = vpack.c.b16 %v1515, %v1511
    %v1760 = vpack.c.b16 %v1520, %v1516
    %v1761 = vpack.c.b16 %v1521, %v1517
    %v1762 = vpack.c.b16 %v1522, %v1518
    %v1763 = vpack.c.b16 %v1523, %v1519
    %v1764 = vpack.c.b16 %v1528, %v1524
    %v1765 = vpack.c.b16 %v1529, %v1525
    %v1766 = vpack.c.b16 %v1530, %v1526
    %v1767 = vpack.c.b16 %v1531, %v1527
    %v1768 = vpack.c.b16 %v1536, %v1532
    %v1769 = vpack.c.b16 %v1537, %v1533
    %v1770 = vpack.c.b16 %v1538, %v1534
    %v1771 = vpack.c.b16 %v1539, %v1535
    %v1772 = vpack.c.b16 %v1544, %v1540
    %v1773 = vpack.c.b16 %v1545, %v1541
    %v1774 = vpack.c.b16 %v1546, %v1542
    %v1775 = vpack.c.b16 %v1547, %v1543
    %v1776 = vpack.c.b16 %v1552, %v1548
    %v1777 = vpack.c.b16 %v1553, %v1549
    %v1778 = vpack.c.b16 %v1554, %v1550
    %v1779 = vpack.c.b16 %v1555, %v1551
    %v1780 = vpack.c.b16 %v1560, %v1556
    %v1781 = vpack.c.b16 %v1561, %v1557
    %v1782 = vpack.c.b16 %v1562, %v1558
    %v1783 = vpack.c.b16 %v1563, %v1559
    %v1784 = vpack.c.b16 %v1568, %v1564
    %v1785 = vpack.c.b16 %v1569, %v1565
    %v1786 = vpack.c.b16 %v1570, %v1566
    %v1787 = vpack.c.b16 %v1571, %v1567
    %v1788 = vpack.c.b16 %v1576, %v1572
    %v1789 = vpack.c.b16 %v1577, %v1573
    %v1790 = vpack.c.b16 %v1578, %v1574
    %v1791 = vpack.c.b16 %v1579, %v1575
    %v1792 = vpack.c.b16 %v1584, %v1580
    %v1793 = vpack.c.b16 %v1585, %v1581
    %v1794 = vpack.c.b16 %v1586, %v1582
    %v1795 = vpack.c.b16 %v1587, %v1583
    %v1796 = vpack.c.b16 %v1592, %v1588
    %v1797 = vpack.c.b16 %v1593, %v1589
    %v1798 = vpack.c.b16 %v1594, %v1590
    %v1799 = vpack.c.b16 %v1595, %v1591
    %v1800 = vpack.c.b16 %v1600, %v1596
    %v1801 = vpack.c.b16 %v1601, %v1597
    %v1802 = vpack.c.b16 %v1602, %v1598
    %v1803 = vpack.c.b16 %v1603, %v1599
    %v1804 = vpack.c.b16 %v1608, %v1604
    %v1805 = vpack.c.b16 %v1609, %v1605
    %v1806 = vpack.c.b16 %v1610, %v1606
    %v1807 = vpack.c.b16 %v1611, %v1607
    %v1808 = vpack.c.b16 %v1616, %v1612
    %v1809 = vpack.c.b16 %v1617, %v1613
    %v1810 = vpack.c.b16 %v1618, %v1614
    %v1811 = vpack.c.b16 %v1619, %v1615
    %v1812 = vpack.c.b16 %v1624, %v1620
    %v1813 = vpack.c.b16 %v1625, %v1621
    %v1814 = vpack.c.b16 %v1626, %v1622
    %v1815 = vpack.c.b16 %v1627, %v1623
    %v1816 = vpack.c.b16 %v1632, %v1628
    %v1817 = vpack.c.b16 %v1633, %v1629
    %v1818 = vpack.c.b16 %v1634, %v1630
    %v1819 = vpack.c.b16 %v1635, %v1631
    %v1820 = vpack.c.b16 %v1640, %v1636
    %v1821 = vpack.c.b16 %v1641, %v1637
    %v1822 = vpack.c.b16 %v1642, %v1638
    %v1823 = vpack.c.b16 %v1643, %v1639
    %v1824 = vpack.c.b16 %v1648, %v1644
    %v1825 = vpack.c.b16 %v1649, %v1645
    %v1826 = vpack.c.b16 %v1650, %v1646
    %v1827 = vpack.c.b16 %v1651, %v1647
    %v1828 = vpack.c.b16 %v1656, %v1652
    %v1829 = vpack.c.b16 %v1657, %v1653
    %v1830 = vpack.c.b16 %v1658, %v1654
    %v1831 = vpack.c.b16 %v1659, %v1655
    %v1832 = vpack.c.b16 %v1664, %v1660
    %v1833 = vpack.c.b16 %v1665, %v1661
    %v1834 = vpack.c.b16 %v1666, %v1662
    %v1835 = vpack.c.b16 %v1667, %v1663
    %v1836 = vpack.c.b16 %v1672, %v1668
    %v1837 = vpack.c.b16 %v1673, %v1669
    %v1838 = vpack.c.b16 %v1674, %v1670
    %v1839 = vpack.c.b16 %v1675, %v1671
    %v1840 = vpack.c.b16 %v1680, %v1676
    %v1841 = vpack.c.b16 %v1681, %v1677
    %v1842 = vpack.c.b16 %v1682, %v1678
    %v1843 = vpack.c.b16 %v1683, %v1679
    %v1844 = vpack.c.b16 %v1688, %v1684
    %v1845 = vpack.c.b16 %v1689, %v1685
    %v1846 = vpack.c.b16 %v1690, %v1686
    %v1847 = vpack.c.b16 %v1691, %v1687
    %v1848 = vpack.c.b16 %v1696, %v1692
    %v1849 = vpack.c.b16 %v1697, %v1693
    %v1850 = vpack.c.b16 %v1698, %v1694
    %v1851 = vpack.c.b16 %v1699, %v1695
    %v1852 = vpack.c.b16 %v1704, %v1700
    %v1853 = vpack.c.b16 %v1705, %v1701
    %v1854 = vpack.c.b16 %v1706, %v1702
    %v1855 = vpack.c.b16 %v1707, %v1703
    %v1856 = vpack.c.b16 %v1712, %v1708
    %v1857 = vpack.c.b16 %v1713, %v1709
    %v1858 = vpack.c.b16 %v1714, %v1710
    %v1859 = vpack.c.b16 %v1715, %v1711
    %v1860 = vpack.c.b16 %v1720, %v1716
    %v1861 = vpack.c.b16 %v1721, %v1717
    %v1862 = vpack.c.b16 %v1722, %v1718
    %v1863 = vpack.c.b16 %v1723, %v1719
    %v1864 = vpack.c.b16 %v1728, %v1724
    %v1865 = vpack.c.b16 %v1729, %v1725
    %v1866 = vpack.c.b16 %v1730, %v1726
    %v1867 = vpack.c.b16 %v1731, %v1727
    %v1868 = vpack.c.b16 %v1736, %v1732
    %v1869 = vpack.c.b16 %v1737, %v1733
    %v1870 = vpack.c.b16 %v1738, %v1734
    %v1871 = vpack.c.b16 %v1739, %v1735
    %v1872 = vpack.c.b16 %v1744, %v1740
    %v1873 = vpack.c.b16 %v1745, %v1741
    %v1874 = vpack.c.b16 %v1746, %v1742
    %v1875 = vpack.c.b16 %v1747, %v1743
    %2004 = vmatprep.subr.bf16.mxu0 %v1777
    %2005 = vmatpush1.bf16.msra.mxu0 %v1776
    %2006 = vmatprep.subr.bf16.mxu0 %v1773
    %2007 = vmatpush1.bf16.msra.mxu0 %v1772
    %2008 = vmatprep.subr.bf16.mxu0 %v1769
    %2009 = vmatpush1.bf16.msra.mxu0 %v1768
    %2010 = vmatprep.subr.bf16.mxu0 %v1765
    %2011 = vmatpush1.bf16.msra.mxu0 %v1764
    %2012 = vmatprep.subr.bf16.mxu0 %v1761
    %2013 = vmatpush1.bf16.msra.mxu0 %v1760
    %2014 = vmatprep.subr.bf16.mxu0 %v1757
    %2015 = vmatpush1.bf16.msra.mxu0 %v1756
    %2016 = vmatprep.subr.bf16.mxu0 %v1753
    %2017 = vmatpush1.bf16.msra.mxu0 %v1752
    %2018 = vmatprep.subr.bf16.mxu0 %v1749
    %2019 = vmatpush1.bf16.msra.mxu0 %v1748
    %2020 = vmatprep.subr.bf16.mxu0 %v1809
    %2021 = vmatpush2.bf16.msra.mxu0 %v1808
    %2022 = vmatprep.subr.bf16.mxu0 %v1805
    %2023 = vmatpush2.bf16.msra.mxu0 %v1804
    %2024 = vmatprep.subr.bf16.mxu0 %v1801
    %2025 = vmatpush2.bf16.msra.mxu0 %v1800
    %2026 = vmatprep.subr.bf16.mxu0 %v1797
    %2027 = vmatpush2.bf16.msra.mxu0 %v1796
    %2028 = vmatprep.subr.bf16.mxu0 %v1793
    %2029 = vmatpush2.bf16.msra.mxu0 %v1792
    %2030 = vmatprep.subr.bf16.mxu0 %v1789
    %2031 = vmatpush2.bf16.msra.mxu0 %v1788
    %2032 = vmatprep.subr.bf16.mxu0 %v1785
    %2033 = vmatpush2.bf16.msra.mxu0 %v1784
    %2034 = vmatprep.subr.bf16.mxu0 %v1781
    %2035 = vmatpush2.bf16.msra.mxu0 %v1780
    %2036 = vmatprep.mubr.bf16.mxu0 %v1211
    %2037 = vmatmul.mubr.bf16.gmra.mxu0 %v1210
    %v2038 = vpop.f32.mrf.mxu0
    %v2039 = vadd.f32 %v1347, %v2038
    %v2040 = vpop.f32.mrf.mxu0
    %v2041 = vadd.f32 %v1351, %v2040
    %v2042 = vpop.f32.mrf.mxu0
    %v2043 = vpop.f32.mrf.mxu0
    %2044 = vdwg.mxu0
    %2045 = vmatprep.subr.bf16.mxu0 %v1841
    %2046 = vmatpush1.bf16.msra.mxu0 %v1840
    %2047 = vmatprep.subr.bf16.mxu0 %v1837
    %2048 = vmatpush1.bf16.msra.mxu0 %v1836
    %2049 = vmatprep.subr.bf16.mxu0 %v1833
    %2050 = vmatpush1.bf16.msra.mxu0 %v1832
    %2051 = vmatprep.subr.bf16.mxu0 %v1829
    %2052 = vmatpush1.bf16.msra.mxu0 %v1828
    %2053 = vmatprep.subr.bf16.mxu0 %v1825
    %2054 = vmatpush1.bf16.msra.mxu0 %v1824
    %2055 = vmatprep.subr.bf16.mxu0 %v1821
    %2056 = vmatpush1.bf16.msra.mxu0 %v1820
    %2057 = vmatprep.subr.bf16.mxu0 %v1817
    %2058 = vmatpush1.bf16.msra.mxu0 %v1816
    %2059 = vmatprep.subr.bf16.mxu0 %v1813
    %2060 = vmatpush1.bf16.msra.mxu0 %v1812
    %2061 = vmatprep.subr.bf16.mxu0 %v1873
    %2062 = vmatpush2.bf16.msra.mxu0 %v1872
    %2063 = vmatprep.subr.bf16.mxu0 %v1869
    %2064 = vmatpush2.bf16.msra.mxu0 %v1868
    %2065 = vmatprep.subr.bf16.mxu0 %v1865
    %2066 = vmatpush2.bf16.msra.mxu0 %v1864
    %2067 = vmatprep.subr.bf16.mxu0 %v1861
    %2068 = vmatpush2.bf16.msra.mxu0 %v1860
    %2069 = vmatprep.subr.bf16.mxu0 %v1857
    %2070 = vmatpush2.bf16.msra.mxu0 %v1856
    %2071 = vmatprep.subr.bf16.mxu0 %v1853
    %2072 = vmatpush2.bf16.msra.mxu0 %v1852
    %2073 = vmatprep.subr.bf16.mxu0 %v1849
    %2074 = vmatpush2.bf16.msra.mxu0 %v1848
    %2075 = vmatprep.subr.bf16.mxu0 %v1845
    %2076 = vmatpush2.bf16.msra.mxu0 %v1844
    %2077 = vmatprep.mubr.bf16.mxu0 %v1213
    %2078 = vmatmul.mubr.bf16.gmra.mxu0 %v1212
    %v2079 = vpop.f32.mrf.mxu0
    %v2080 = vadd.f32 %v2039, %v2079
    %v2081 = vpop.f32.mrf.mxu0
    %v2082 = vadd.f32 %v2041, %v2081
    %v2083 = vpop.f32.mrf.mxu0
    %v2084 = vpop.f32.mrf.mxu0
    %2085 = vdwg.mxu0
    %2086 = vmatprep.subr.bf16.mxu0 %v1779
    %2087 = vmatpush1.bf16.msra.mxu0 %v1778
    %2088 = vmatprep.subr.bf16.mxu0 %v1775
    %2089 = vmatpush1.bf16.msra.mxu0 %v1774
    %2090 = vmatprep.subr.bf16.mxu0 %v1771
    %2091 = vmatpush1.bf16.msra.mxu0 %v1770
    %2092 = vmatprep.subr.bf16.mxu0 %v1767
    %2093 = vmatpush1.bf16.msra.mxu0 %v1766
    %2094 = vmatprep.subr.bf16.mxu0 %v1763
    %2095 = vmatpush1.bf16.msra.mxu0 %v1762
    %2096 = vmatprep.subr.bf16.mxu0 %v1759
    %2097 = vmatpush1.bf16.msra.mxu0 %v1758
    %2098 = vmatprep.subr.bf16.mxu0 %v1755
    %2099 = vmatpush1.bf16.msra.mxu0 %v1754
    %2100 = vmatprep.subr.bf16.mxu0 %v1751
    %2101 = vmatpush1.bf16.msra.mxu0 %v1750
    %2102 = vmatprep.subr.bf16.mxu0 %v1811
    %2103 = vmatpush2.bf16.msra.mxu0 %v1810
    %2104 = vmatprep.subr.bf16.mxu0 %v1807
    %2105 = vmatpush2.bf16.msra.mxu0 %v1806
    %2106 = vmatprep.subr.bf16.mxu0 %v1803
    %2107 = vmatpush2.bf16.msra.mxu0 %v1802
    %2108 = vmatprep.subr.bf16.mxu0 %v1799
    %2109 = vmatpush2.bf16.msra.mxu0 %v1798
    %2110 = vmatprep.subr.bf16.mxu0 %v1795
    %2111 = vmatpush2.bf16.msra.mxu0 %v1794
    %2112 = vmatprep.subr.bf16.mxu0 %v1791
    %2113 = vmatpush2.bf16.msra.mxu0 %v1790
    %2114 = vmatprep.subr.bf16.mxu0 %v1787
    %2115 = vmatpush2.bf16.msra.mxu0 %v1786
    %2116 = vmatprep.subr.bf16.mxu0 %v1783
    %2117 = vmatpush2.bf16.msra.mxu0 %v1782
    %2118 = vmatprep.mubr.bf16.mxu0 %v1211
    %2119 = vmatmul.mubr.bf16.gmra.mxu0 %v1210
    %v2120 = vpop.f32.mrf.mxu0
    %v2121 = vadd.f32 %v1355, %v2120
    %v2122 = vpop.f32.mrf.mxu0
    %v2123 = vadd.f32 %v1359, %v2122
    %v2124 = vpop.f32.mrf.mxu0
    %v2125 = vpop.f32.mrf.mxu0
    %2126 = vdwg.mxu0
    %2127 = vmatprep.subr.bf16.mxu0 %v1843
    %2128 = vmatpush1.bf16.msra.mxu0 %v1842
    %2129 = vmatprep.subr.bf16.mxu0 %v1839
    %2130 = vmatpush1.bf16.msra.mxu0 %v1838
    %2131 = vmatprep.subr.bf16.mxu0 %v1835
    %2132 = vmatpush1.bf16.msra.mxu0 %v1834
    %2133 = vmatprep.subr.bf16.mxu0 %v1831
    %2134 = vmatpush1.bf16.msra.mxu0 %v1830
    %2135 = vmatprep.subr.bf16.mxu0 %v1827
    %2136 = vmatpush1.bf16.msra.mxu0 %v1826
    %2137 = vmatprep.subr.bf16.mxu0 %v1823
    %2138 = vmatpush1.bf16.msra.mxu0 %v1822
    %2139 = vmatprep.subr.bf16.mxu0 %v1819
    %2140 = vmatpush1.bf16.msra.mxu0 %v1818
    %2141 = vmatprep.subr.bf16.mxu0 %v1815
    %2142 = vmatpush1.bf16.msra.mxu0 %v1814
    %2143 = vmatprep.subr.bf16.mxu0 %v1875
    %2144 = vmatpush2.bf16.msra.mxu0 %v1874
    %2145 = vmatprep.subr.bf16.mxu0 %v1871
    %2146 = vmatpush2.bf16.msra.mxu0 %v1870
    %2147 = vmatprep.subr.bf16.mxu0 %v1867
    %2148 = vmatpush2.bf16.msra.mxu0 %v1866
    %2149 = vmatprep.subr.bf16.mxu0 %v1863
    %2150 = vmatpush2.bf16.msra.mxu0 %v1862
    %2151 = vmatprep.subr.bf16.mxu0 %v1859
    %2152 = vmatpush2.bf16.msra.mxu0 %v1858
    %2153 = vmatprep.subr.bf16.mxu0 %v1855
    %2154 = vmatpush2.bf16.msra.mxu0 %v1854
    %2155 = vmatprep.subr.bf16.mxu0 %v1851
    %2156 = vmatpush2.bf16.msra.mxu0 %v1850
    %2157 = vmatprep.subr.bf16.mxu0 %v1847
    %2158 = vmatpush2.bf16.msra.mxu0 %v1846
    %2159 = vmatprep.mubr.bf16.mxu0 %v1213
    %2160 = vmatmul.mubr.bf16.gmra.mxu0 %v1212
    %v2161 = vpop.f32.mrf.mxu0
    %v2162 = vadd.f32 %v2121, %v2161
    %v2163 = vpop.f32.mrf.mxu0
    %v2164 = vadd.f32 %v2123, %v2163
    %v2165 = vpop.f32.mrf.mxu0
    %v2166 = vpop.f32.mrf.mxu0
    %2167 = vdwg.mxu0
    %v2168 = vadd.f32 %v2080, %v1202
    %v2169 = vadd.f32 %v2082, %v1203
    %v2170 = vadd.f32 %v2162, %v1204
    %v2171 = vadd.f32 %v2164, %v1205
    %v2172 = vmax.f32 %v2168, 0.0
    %v2173 = vmax.f32 %v2169, 0.0
    %v2174 = vmax.f32 %v2170, 0.0
    %v2175 = vmax.f32 %v2171, 0.0
    %v2176 = vpack.c.bf16 %v2172, %v2172
    %v2177 = vpack.c.bf16 %v2173, %v2173
    %v2178 = vpack.c.bf16 %v2174, %v2174
    %v2179 = vpack.c.bf16 %v2175, %v2175
    %v2180 = vld [vmem:[#allocation7] sm:$0xff]
    %v2181 = vld [vmem:[#allocation7 + $0x8] sm:$0xff]
    %v2182 = vld [vmem:[#allocation7 + $0x10] sm:$0xff]
    %v2183 = vld [vmem:[#allocation7 + $0x18] sm:$0xff]
    %v2184 = vld [vmem:[#allocation7 + $0x20] sm:$0xff]
    %v2185 = vld [vmem:[#allocation7 + $0x28] sm:$0xff]
    %v2186 = vld [vmem:[#allocation7 + $0x30] sm:$0xff]
    %v2187 = vld [vmem:[#allocation7 + $0x38] sm:$0xff]
    %v2188 = vld [vmem:[#allocation7 + $0x40] sm:$0xff]
    %v2189 = vld [vmem:[#allocation7 + $0x48] sm:$0xff]
    %v2190 = vld [vmem:[#allocation7 + $0x50] sm:$0xff]
    %v2191 = vld [vmem:[#allocation7 + $0x58] sm:$0xff]
    %v2192 = vld [vmem:[#allocation7 + $0x60] sm:$0xff]
    %v2193 = vld [vmem:[#allocation7 + $0x68] sm:$0xff]
    %v2194 = vld [vmem:[#allocation7 + $0x70] sm:$0xff]
    %v2195 = vld [vmem:[#allocation7 + $0x78] sm:$0xff]
    %v2196 = vld [vmem:[#allocation7 + $0x80] sm:$0xff]
    %v2197 = vld [vmem:[#allocation7 + $0x88] sm:$0xff]
    %v2198 = vld [vmem:[#allocation7 + $0x90] sm:$0xff]
    %v2199 = vld [vmem:[#allocation7 + $0x98] sm:$0xff]
    %v2200 = vld [vmem:[#allocation7 + $0xa0] sm:$0xff]
    %v2201 = vld [vmem:[#allocation7 + $0xa8] sm:$0xff]
    %v2202 = vld [vmem:[#allocation7 + $0xb0] sm:$0xff]
    %v2203 = vld [vmem:[#allocation7 + $0xb8] sm:$0xff]
    %v2204 = vld [vmem:[#allocation7 + $0xc0] sm:$0xff]
    %v2205 = vld [vmem:[#allocation7 + $0xc8] sm:$0xff]
    %v2206 = vld [vmem:[#allocation7 + $0xd0] sm:$0xff]
    %v2207 = vld [vmem:[#allocation7 + $0xd8] sm:$0xff]
    %v2208 = vld [vmem:[#allocation7 + $0xe0] sm:$0xff]
    %v2209 = vld [vmem:[#allocation7 + $0xe8] sm:$0xff]
    %v2210 = vld [vmem:[#allocation7 + $0xf0] sm:$0xff]
    %v2211 = vld [vmem:[#allocation7 + $0xf8] sm:$0xff]
    %v2212 = vld [vmem:[#allocation7 + $0x100] sm:$0xff]
    %v2213 = vld [vmem:[#allocation7 + $0x108] sm:$0xff]
    %v2214 = vld [vmem:[#allocation7 + $0x110] sm:$0xff]
    %v2215 = vld [vmem:[#allocation7 + $0x118] sm:$0xff]
    %v2216 = vld [vmem:[#allocation7 + $0x120] sm:$0xff]
    %v2217 = vld [vmem:[#allocation7 + $0x128] sm:$0xff]
    %v2218 = vld [vmem:[#allocation7 + $0x130] sm:$0xff]
    %v2219 = vld [vmem:[#allocation7 + $0x138] sm:$0xff]
    %v2220 = vld [vmem:[#allocation7 + $0x140] sm:$0xff]
    %v2221 = vld [vmem:[#allocation7 + $0x148] sm:$0xff]
    %v2222 = vld [vmem:[#allocation7 + $0x150] sm:$0xff]
    %v2223 = vld [vmem:[#allocation7 + $0x158] sm:$0xff]
    %v2224 = vld [vmem:[#allocation7 + $0x160] sm:$0xff]
    %v2225 = vld [vmem:[#allocation7 + $0x168] sm:$0xff]
    %v2226 = vld [vmem:[#allocation7 + $0x170] sm:$0xff]
    %v2227 = vld [vmem:[#allocation7 + $0x178] sm:$0xff]
    %v2228 = vld [vmem:[#allocation7 + $0x180] sm:$0xff]
    %v2229 = vld [vmem:[#allocation7 + $0x188] sm:$0xff]
    %v2230 = vld [vmem:[#allocation7 + $0x190] sm:$0xff]
    %v2231 = vld [vmem:[#allocation7 + $0x198] sm:$0xff]
    %v2232 = vld [vmem:[#allocation7 + $0x1a0] sm:$0xff]
    %v2233 = vld [vmem:[#allocation7 + $0x1a8] sm:$0xff]
    %v2234 = vld [vmem:[#allocation7 + $0x1b0] sm:$0xff]
    %v2235 = vld [vmem:[#allocation7 + $0x1b8] sm:$0xff]
    %v2236 = vld [vmem:[#allocation7 + $0x1c0] sm:$0xff]
    %v2237 = vld [vmem:[#allocation7 + $0x1c8] sm:$0xff]
    %v2238 = vld [vmem:[#allocation7 + $0x1d0] sm:$0xff]
    %v2239 = vld [vmem:[#allocation7 + $0x1d8] sm:$0xff]
    %v2240 = vld [vmem:[#allocation7 + $0x1e0] sm:$0xff]
    %v2241 = vld [vmem:[#allocation7 + $0x1e8] sm:$0xff]
    %v2242 = vld [vmem:[#allocation7 + $0x1f0] sm:$0xff]
    %v2243 = vld [vmem:[#allocation7 + $0x1f8] sm:$0xff]
    %v2244 = vld [vmem:[#allocation7 + $0x200] sm:$0xff]
    %v2245 = vld [vmem:[#allocation7 + $0x208] sm:$0xff]
    %v2246 = vld [vmem:[#allocation7 + $0x210] sm:$0xff]
    %v2247 = vld [vmem:[#allocation7 + $0x218] sm:$0xff]
    %v2248 = vld [vmem:[#allocation7 + $0x220] sm:$0xff]
    %v2249 = vld [vmem:[#allocation7 + $0x228] sm:$0xff]
    %v2250 = vld [vmem:[#allocation7 + $0x230] sm:$0xff]
    %v2251 = vld [vmem:[#allocation7 + $0x238] sm:$0xff]
    %v2252 = vld [vmem:[#allocation7 + $0x240] sm:$0xff]
    %v2253 = vld [vmem:[#allocation7 + $0x248] sm:$0xff]
    %v2254 = vld [vmem:[#allocation7 + $0x250] sm:$0xff]
    %v2255 = vld [vmem:[#allocation7 + $0x258] sm:$0xff]
    %v2256 = vld [vmem:[#allocation7 + $0x260] sm:$0xff]
    %v2257 = vld [vmem:[#allocation7 + $0x268] sm:$0xff]
    %v2258 = vld [vmem:[#allocation7 + $0x270] sm:$0xff]
    %v2259 = vld [vmem:[#allocation7 + $0x278] sm:$0xff]
    %v2260 = vld [vmem:[#allocation7 + $0x280] sm:$0xff]
    %v2261 = vld [vmem:[#allocation7 + $0x288] sm:$0xff]
    %v2262 = vld [vmem:[#allocation7 + $0x290] sm:$0xff]
    %v2263 = vld [vmem:[#allocation7 + $0x298] sm:$0xff]
    %v2264 = vld [vmem:[#allocation7 + $0x2a0] sm:$0xff]
    %v2265 = vld [vmem:[#allocation7 + $0x2a8] sm:$0xff]
    %v2266 = vld [vmem:[#allocation7 + $0x2b0] sm:$0xff]
    %v2267 = vld [vmem:[#allocation7 + $0x2b8] sm:$0xff]
    %v2268 = vld [vmem:[#allocation7 + $0x2c0] sm:$0xff]
    %v2269 = vld [vmem:[#allocation7 + $0x2c8] sm:$0xff]
    %v2270 = vld [vmem:[#allocation7 + $0x2d0] sm:$0xff]
    %v2271 = vld [vmem:[#allocation7 + $0x2d8] sm:$0xff]
    %v2272 = vld [vmem:[#allocation7 + $0x2e0] sm:$0xff]
    %v2273 = vld [vmem:[#allocation7 + $0x2e8] sm:$0xff]
    %v2274 = vld [vmem:[#allocation7 + $0x2f0] sm:$0xff]
    %v2275 = vld [vmem:[#allocation7 + $0x2f8] sm:$0xff]
    %v2276 = vld [vmem:[#allocation7 + $0x300] sm:$0xff]
    %v2277 = vld [vmem:[#allocation7 + $0x308] sm:$0xff]
    %v2278 = vld [vmem:[#allocation7 + $0x310] sm:$0xff]
    %v2279 = vld [vmem:[#allocation7 + $0x318] sm:$0xff]
    %v2280 = vld [vmem:[#allocation7 + $0x320] sm:$0xff]
    %v2281 = vld [vmem:[#allocation7 + $0x328] sm:$0xff]
    %v2282 = vld [vmem:[#allocation7 + $0x330] sm:$0xff]
    %v2283 = vld [vmem:[#allocation7 + $0x338] sm:$0xff]
    %v2284 = vld [vmem:[#allocation7 + $0x340] sm:$0xff]
    %v2285 = vld [vmem:[#allocation7 + $0x348] sm:$0xff]
    %v2286 = vld [vmem:[#allocation7 + $0x350] sm:$0xff]
    %v2287 = vld [vmem:[#allocation7 + $0x358] sm:$0xff]
    %v2288 = vld [vmem:[#allocation7 + $0x360] sm:$0xff]
    %v2289 = vld [vmem:[#allocation7 + $0x368] sm:$0xff]
    %v2290 = vld [vmem:[#allocation7 + $0x370] sm:$0xff]
    %v2291 = vld [vmem:[#allocation7 + $0x378] sm:$0xff]
    %v2292 = vld [vmem:[#allocation7 + $0x380] sm:$0xff]
    %v2293 = vld [vmem:[#allocation7 + $0x388] sm:$0xff]
    %v2294 = vld [vmem:[#allocation7 + $0x390] sm:$0xff]
    %v2295 = vld [vmem:[#allocation7 + $0x398] sm:$0xff]
    %v2296 = vld [vmem:[#allocation7 + $0x3a0] sm:$0xff]
    %v2297 = vld [vmem:[#allocation7 + $0x3a8] sm:$0xff]
    %v2298 = vld [vmem:[#allocation7 + $0x3b0] sm:$0xff]
    %v2299 = vld [vmem:[#allocation7 + $0x3b8] sm:$0xff]
    %v2300 = vld [vmem:[#allocation7 + $0x3c0] sm:$0xff]
    %v2301 = vld [vmem:[#allocation7 + $0x3c8] sm:$0xff]
    %v2302 = vld [vmem:[#allocation7 + $0x3d0] sm:$0xff]
    %v2303 = vld [vmem:[#allocation7 + $0x3d8] sm:$0xff]
    %v2304 = vld [vmem:[#allocation7 + $0x3e0] sm:$0xff]
    %v2305 = vld [vmem:[#allocation7 + $0x3e8] sm:$0xff]
    %v2306 = vld [vmem:[#allocation7 + $0x3f0] sm:$0xff]
    %v2307 = vld [vmem:[#allocation7 + $0x3f8] sm:$0xff]
    %v2308 = vld [vmem:[%s8] sm:$0xf]
    %v2310 = vlaneseq
    %v2311 = vshrl.u32 %v2310, 7
    %v2312 = vsub.s32 0, %v2311
    %v2313 = vrot.slane %v2308, %v2312
    %v2314 = vlaneseq
    %v2315 = vshrl.u32 %v2314, 7
    %v2316 = vsub.s32 1, %v2315
    %v2317 = vrot.slane %v2308, %v2316
    %v2318 = vlaneseq
    %v2319 = vshrl.u32 %v2318, 7
    %v2320 = vsub.s32 2, %v2319
    %v2321 = vrot.slane %v2308, %v2320
    %v2322 = vlaneseq
    %v2323 = vshrl.u32 %v2322, 7
    %v2324 = vsub.s32 3, %v2323
    %v2325 = vrot.slane %v2308, %v2324
    %v2458 = vunpack.c.l.b16 %v2180
    %v2459 = vunpack.c.h.b16 %v2180
    %v2460 = vunpack.c.l.b16 %v2181
    %v2461 = vunpack.c.h.b16 %v2181
    %v2462 = vunpack.c.l.b16 %v2182
    %v2463 = vunpack.c.h.b16 %v2182
    %v2464 = vunpack.c.l.b16 %v2183
    %v2465 = vunpack.c.h.b16 %v2183
    %v2466 = vunpack.c.l.b16 %v2184
    %v2467 = vunpack.c.h.b16 %v2184
    %v2468 = vunpack.c.l.b16 %v2185
    %v2469 = vunpack.c.h.b16 %v2185
    %v2470 = vunpack.c.l.b16 %v2186
    %v2471 = vunpack.c.h.b16 %v2186
    %v2472 = vunpack.c.l.b16 %v2187
    %v2473 = vunpack.c.h.b16 %v2187
    %v2474 = vunpack.c.l.b16 %v2188
    %v2475 = vunpack.c.h.b16 %v2188
    %v2476 = vunpack.c.l.b16 %v2189
    %v2477 = vunpack.c.h.b16 %v2189
    %v2478 = vunpack.c.l.b16 %v2190
    %v2479 = vunpack.c.h.b16 %v2190
    %v2480 = vunpack.c.l.b16 %v2191
    %v2481 = vunpack.c.h.b16 %v2191
    %v2482 = vunpack.c.l.b16 %v2192
    %v2483 = vunpack.c.h.b16 %v2192
    %v2484 = vunpack.c.l.b16 %v2193
    %v2485 = vunpack.c.h.b16 %v2193
    %v2486 = vunpack.c.l.b16 %v2194
    %v2487 = vunpack.c.h.b16 %v2194
    %v2488 = vunpack.c.l.b16 %v2195
    %v2489 = vunpack.c.h.b16 %v2195
    %v2490 = vunpack.c.l.b16 %v2196
    %v2491 = vunpack.c.h.b16 %v2196
    %v2492 = vunpack.c.l.b16 %v2197
    %v2493 = vunpack.c.h.b16 %v2197
    %v2494 = vunpack.c.l.b16 %v2198
    %v2495 = vunpack.c.h.b16 %v2198
    %v2496 = vunpack.c.l.b16 %v2199
    %v2497 = vunpack.c.h.b16 %v2199
    %v2498 = vunpack.c.l.b16 %v2200
    %v2499 = vunpack.c.h.b16 %v2200
    %v2500 = vunpack.c.l.b16 %v2201
    %v2501 = vunpack.c.h.b16 %v2201
    %v2502 = vunpack.c.l.b16 %v2202
    %v2503 = vunpack.c.h.b16 %v2202
    %v2504 = vunpack.c.l.b16 %v2203
    %v2505 = vunpack.c.h.b16 %v2203
    %v2506 = vunpack.c.l.b16 %v2204
    %v2507 = vunpack.c.h.b16 %v2204
    %v2508 = vunpack.c.l.b16 %v2205
    %v2509 = vunpack.c.h.b16 %v2205
    %v2510 = vunpack.c.l.b16 %v2206
    %v2511 = vunpack.c.h.b16 %v2206
    %v2512 = vunpack.c.l.b16 %v2207
    %v2513 = vunpack.c.h.b16 %v2207
    %v2514 = vunpack.c.l.b16 %v2208
    %v2515 = vunpack.c.h.b16 %v2208
    %v2516 = vunpack.c.l.b16 %v2209
    %v2517 = vunpack.c.h.b16 %v2209
    %v2518 = vunpack.c.l.b16 %v2210
    %v2519 = vunpack.c.h.b16 %v2210
    %v2520 = vunpack.c.l.b16 %v2211
    %v2521 = vunpack.c.h.b16 %v2211
    %v2522 = vunpack.c.l.b16 %v2212
    %v2523 = vunpack.c.h.b16 %v2212
    %v2524 = vunpack.c.l.b16 %v2213
    %v2525 = vunpack.c.h.b16 %v2213
    %v2526 = vunpack.c.l.b16 %v2214
    %v2527 = vunpack.c.h.b16 %v2214
    %v2528 = vunpack.c.l.b16 %v2215
    %v2529 = vunpack.c.h.b16 %v2215
    %v2530 = vunpack.c.l.b16 %v2216
    %v2531 = vunpack.c.h.b16 %v2216
    %v2532 = vunpack.c.l.b16 %v2217
    %v2533 = vunpack.c.h.b16 %v2217
    %v2534 = vunpack.c.l.b16 %v2218
    %v2535 = vunpack.c.h.b16 %v2218
    %v2536 = vunpack.c.l.b16 %v2219
    %v2537 = vunpack.c.h.b16 %v2219
    %v2538 = vunpack.c.l.b16 %v2220
    %v2539 = vunpack.c.h.b16 %v2220
    %v2540 = vunpack.c.l.b16 %v2221
    %v2541 = vunpack.c.h.b16 %v2221
    %v2542 = vunpack.c.l.b16 %v2222
    %v2543 = vunpack.c.h.b16 %v2222
    %v2544 = vunpack.c.l.b16 %v2223
    %v2545 = vunpack.c.h.b16 %v2223
    %v2546 = vunpack.c.l.b16 %v2224
    %v2547 = vunpack.c.h.b16 %v2224
    %v2548 = vunpack.c.l.b16 %v2225
    %v2549 = vunpack.c.h.b16 %v2225
    %v2550 = vunpack.c.l.b16 %v2226
    %v2551 = vunpack.c.h.b16 %v2226
    %v2552 = vunpack.c.l.b16 %v2227
    %v2553 = vunpack.c.h.b16 %v2227
    %v2554 = vunpack.c.l.b16 %v2228
    %v2555 = vunpack.c.h.b16 %v2228
    %v2556 = vunpack.c.l.b16 %v2229
    %v2557 = vunpack.c.h.b16 %v2229
    %v2558 = vunpack.c.l.b16 %v2230
    %v2559 = vunpack.c.h.b16 %v2230
    %v2560 = vunpack.c.l.b16 %v2231
    %v2561 = vunpack.c.h.b16 %v2231
    %v2562 = vunpack.c.l.b16 %v2232
    %v2563 = vunpack.c.h.b16 %v2232
    %v2564 = vunpack.c.l.b16 %v2233
    %v2565 = vunpack.c.h.b16 %v2233
    %v2566 = vunpack.c.l.b16 %v2234
    %v2567 = vunpack.c.h.b16 %v2234
    %v2568 = vunpack.c.l.b16 %v2235
    %v2569 = vunpack.c.h.b16 %v2235
    %v2570 = vunpack.c.l.b16 %v2236
    %v2571 = vunpack.c.h.b16 %v2236
    %v2572 = vunpack.c.l.b16 %v2237
    %v2573 = vunpack.c.h.b16 %v2237
    %v2574 = vunpack.c.l.b16 %v2238
    %v2575 = vunpack.c.h.b16 %v2238
    %v2576 = vunpack.c.l.b16 %v2239
    %v2577 = vunpack.c.h.b16 %v2239
    %v2578 = vunpack.c.l.b16 %v2240
    %v2579 = vunpack.c.h.b16 %v2240
    %v2580 = vunpack.c.l.b16 %v2241
    %v2581 = vunpack.c.h.b16 %v2241
    %v2582 = vunpack.c.l.b16 %v2242
    %v2583 = vunpack.c.h.b16 %v2242
    %v2584 = vunpack.c.l.b16 %v2243
    %v2585 = vunpack.c.h.b16 %v2243
    %v2586 = vunpack.c.l.b16 %v2244
    %v2587 = vunpack.c.h.b16 %v2244
    %v2588 = vunpack.c.l.b16 %v2245
    %v2589 = vunpack.c.h.b16 %v2245
    %v2590 = vunpack.c.l.b16 %v2246
    %v2591 = vunpack.c.h.b16 %v2246
    %v2592 = vunpack.c.l.b16 %v2247
    %v2593 = vunpack.c.h.b16 %v2247
    %v2594 = vunpack.c.l.b16 %v2248
    %v2595 = vunpack.c.h.b16 %v2248
    %v2596 = vunpack.c.l.b16 %v2249
    %v2597 = vunpack.c.h.b16 %v2249
    %v2598 = vunpack.c.l.b16 %v2250
    %v2599 = vunpack.c.h.b16 %v2250
    %v2600 = vunpack.c.l.b16 %v2251
    %v2601 = vunpack.c.h.b16 %v2251
    %v2602 = vunpack.c.l.b16 %v2252
    %v2603 = vunpack.c.h.b16 %v2252
    %v2604 = vunpack.c.l.b16 %v2253
    %v2605 = vunpack.c.h.b16 %v2253
    %v2606 = vunpack.c.l.b16 %v2254
    %v2607 = vunpack.c.h.b16 %v2254
    %v2608 = vunpack.c.l.b16 %v2255
    %v2609 = vunpack.c.h.b16 %v2255
    %v2610 = vunpack.c.l.b16 %v2256
    %v2611 = vunpack.c.h.b16 %v2256
    %v2612 = vunpack.c.l.b16 %v2257
    %v2613 = vunpack.c.h.b16 %v2257
    %v2614 = vunpack.c.l.b16 %v2258
    %v2615 = vunpack.c.h.b16 %v2258
    %v2616 = vunpack.c.l.b16 %v2259
    %v2617 = vunpack.c.h.b16 %v2259
    %v2618 = vunpack.c.l.b16 %v2260
    %v2619 = vunpack.c.h.b16 %v2260
    %v2620 = vunpack.c.l.b16 %v2261
    %v2621 = vunpack.c.h.b16 %v2261
    %v2622 = vunpack.c.l.b16 %v2262
    %v2623 = vunpack.c.h.b16 %v2262
    %v2624 = vunpack.c.l.b16 %v2263
    %v2625 = vunpack.c.h.b16 %v2263
    %v2626 = vunpack.c.l.b16 %v2264
    %v2627 = vunpack.c.h.b16 %v2264
    %v2628 = vunpack.c.l.b16 %v2265
    %v2629 = vunpack.c.h.b16 %v2265
    %v2630 = vunpack.c.l.b16 %v2266
    %v2631 = vunpack.c.h.b16 %v2266
    %v2632 = vunpack.c.l.b16 %v2267
    %v2633 = vunpack.c.h.b16 %v2267
    %v2634 = vunpack.c.l.b16 %v2268
    %v2635 = vunpack.c.h.b16 %v2268
    %v2636 = vunpack.c.l.b16 %v2269
    %v2637 = vunpack.c.h.b16 %v2269
    %v2638 = vunpack.c.l.b16 %v2270
    %v2639 = vunpack.c.h.b16 %v2270
    %v2640 = vunpack.c.l.b16 %v2271
    %v2641 = vunpack.c.h.b16 %v2271
    %v2642 = vunpack.c.l.b16 %v2272
    %v2643 = vunpack.c.h.b16 %v2272
    %v2644 = vunpack.c.l.b16 %v2273
    %v2645 = vunpack.c.h.b16 %v2273
    %v2646 = vunpack.c.l.b16 %v2274
    %v2647 = vunpack.c.h.b16 %v2274
    %v2648 = vunpack.c.l.b16 %v2275
    %v2649 = vunpack.c.h.b16 %v2275
    %v2650 = vunpack.c.l.b16 %v2276
    %v2651 = vunpack.c.h.b16 %v2276
    %v2652 = vunpack.c.l.b16 %v2277
    %v2653 = vunpack.c.h.b16 %v2277
    %v2654 = vunpack.c.l.b16 %v2278
    %v2655 = vunpack.c.h.b16 %v2278
    %v2656 = vunpack.c.l.b16 %v2279
    %v2657 = vunpack.c.h.b16 %v2279
    %v2658 = vunpack.c.l.b16 %v2280
    %v2659 = vunpack.c.h.b16 %v2280
    %v2660 = vunpack.c.l.b16 %v2281
    %v2661 = vunpack.c.h.b16 %v2281
    %v2662 = vunpack.c.l.b16 %v2282
    %v2663 = vunpack.c.h.b16 %v2282
    %v2664 = vunpack.c.l.b16 %v2283
    %v2665 = vunpack.c.h.b16 %v2283
    %v2666 = vunpack.c.l.b16 %v2284
    %v2667 = vunpack.c.h.b16 %v2284
    %v2668 = vunpack.c.l.b16 %v2285
    %v2669 = vunpack.c.h.b16 %v2285
    %v2670 = vunpack.c.l.b16 %v2286
    %v2671 = vunpack.c.h.b16 %v2286
    %v2672 = vunpack.c.l.b16 %v2287
    %v2673 = vunpack.c.h.b16 %v2287
    %v2674 = vunpack.c.l.b16 %v2288
    %v2675 = vunpack.c.h.b16 %v2288
    %v2676 = vunpack.c.l.b16 %v2289
    %v2677 = vunpack.c.h.b16 %v2289
    %v2678 = vunpack.c.l.b16 %v2290
    %v2679 = vunpack.c.h.b16 %v2290
    %v2680 = vunpack.c.l.b16 %v2291
    %v2681 = vunpack.c.h.b16 %v2291
    %v2682 = vunpack.c.l.b16 %v2292
    %v2683 = vunpack.c.h.b16 %v2292
    %v2684 = vunpack.c.l.b16 %v2293
    %v2685 = vunpack.c.h.b16 %v2293
    %v2686 = vunpack.c.l.b16 %v2294
    %v2687 = vunpack.c.h.b16 %v2294
    %v2688 = vunpack.c.l.b16 %v2295
    %v2689 = vunpack.c.h.b16 %v2295
    %v2690 = vunpack.c.l.b16 %v2296
    %v2691 = vunpack.c.h.b16 %v2296
    %v2692 = vunpack.c.l.b16 %v2297
    %v2693 = vunpack.c.h.b16 %v2297
    %v2694 = vunpack.c.l.b16 %v2298
    %v2695 = vunpack.c.h.b16 %v2298
    %v2696 = vunpack.c.l.b16 %v2299
    %v2697 = vunpack.c.h.b16 %v2299
    %v2698 = vunpack.c.l.b16 %v2300
    %v2699 = vunpack.c.h.b16 %v2300
    %v2700 = vunpack.c.l.b16 %v2301
    %v2701 = vunpack.c.h.b16 %v2301
    %v2702 = vunpack.c.l.b16 %v2302
    %v2703 = vunpack.c.h.b16 %v2302
    %v2704 = vunpack.c.l.b16 %v2303
    %v2705 = vunpack.c.h.b16 %v2303
    %v2706 = vunpack.c.l.b16 %v2304
    %v2707 = vunpack.c.h.b16 %v2304
    %v2708 = vunpack.c.l.b16 %v2305
    %v2709 = vunpack.c.h.b16 %v2305
    %v2710 = vunpack.c.l.b16 %v2306
    %v2711 = vunpack.c.h.b16 %v2306
    %v2712 = vunpack.c.l.b16 %v2307
    %v2713 = vunpack.c.h.b16 %v2307
    %v2714 = vpack.c.b16 %v2462, %v2458
    %v2715 = vpack.c.b16 %v2463, %v2459
    %v2716 = vpack.c.b16 %v2464, %v2460
    %v2717 = vpack.c.b16 %v2465, %v2461
    %v2718 = vpack.c.b16 %v2470, %v2466
    %v2719 = vpack.c.b16 %v2471, %v2467
    %v2720 = vpack.c.b16 %v2472, %v2468
    %v2721 = vpack.c.b16 %v2473, %v2469
    %v2722 = vpack.c.b16 %v2478, %v2474
    %v2723 = vpack.c.b16 %v2479, %v2475
    %v2724 = vpack.c.b16 %v2480, %v2476
    %v2725 = vpack.c.b16 %v2481, %v2477
    %v2726 = vpack.c.b16 %v2486, %v2482
    %v2727 = vpack.c.b16 %v2487, %v2483
    %v2728 = vpack.c.b16 %v2488, %v2484
    %v2729 = vpack.c.b16 %v2489, %v2485
    %v2730 = vpack.c.b16 %v2494, %v2490
    %v2731 = vpack.c.b16 %v2495, %v2491
    %v2732 = vpack.c.b16 %v2496, %v2492
    %v2733 = vpack.c.b16 %v2497, %v2493
    %v2734 = vpack.c.b16 %v2502, %v2498
    %v2735 = vpack.c.b16 %v2503, %v2499
    %v2736 = vpack.c.b16 %v2504, %v2500
    %v2737 = vpack.c.b16 %v2505, %v2501
    %v2738 = vpack.c.b16 %v2510, %v2506
    %v2739 = vpack.c.b16 %v2511, %v2507
    %v2740 = vpack.c.b16 %v2512, %v2508
    %v2741 = vpack.c.b16 %v2513, %v2509
    %v2742 = vpack.c.b16 %v2518, %v2514
    %v2743 = vpack.c.b16 %v2519, %v2515
    %v2744 = vpack.c.b16 %v2520, %v2516
    %v2745 = vpack.c.b16 %v2521, %v2517
    %v2746 = vpack.c.b16 %v2526, %v2522
    %v2747 = vpack.c.b16 %v2527, %v2523
    %v2748 = vpack.c.b16 %v2528, %v2524
    %v2749 = vpack.c.b16 %v2529, %v2525
    %v2750 = vpack.c.b16 %v2534, %v2530
    %v2751 = vpack.c.b16 %v2535, %v2531
    %v2752 = vpack.c.b16 %v2536, %v2532
    %v2753 = vpack.c.b16 %v2537, %v2533
    %v2754 = vpack.c.b16 %v2542, %v2538
    %v2755 = vpack.c.b16 %v2543, %v2539
    %v2756 = vpack.c.b16 %v2544, %v2540
    %v2757 = vpack.c.b16 %v2545, %v2541
    %v2758 = vpack.c.b16 %v2550, %v2546
    %v2759 = vpack.c.b16 %v2551, %v2547
    %v2760 = vpack.c.b16 %v2552, %v2548
    %v2761 = vpack.c.b16 %v2553, %v2549
    %v2762 = vpack.c.b16 %v2558, %v2554
    %v2763 = vpack.c.b16 %v2559, %v2555
    %v2764 = vpack.c.b16 %v2560, %v2556
    %v2765 = vpack.c.b16 %v2561, %v2557
    %v2766 = vpack.c.b16 %v2566, %v2562
    %v2767 = vpack.c.b16 %v2567, %v2563
    %v2768 = vpack.c.b16 %v2568, %v2564
    %v2769 = vpack.c.b16 %v2569, %v2565
    %v2770 = vpack.c.b16 %v2574, %v2570
    %v2771 = vpack.c.b16 %v2575, %v2571
    %v2772 = vpack.c.b16 %v2576, %v2572
    %v2773 = vpack.c.b16 %v2577, %v2573
    %v2774 = vpack.c.b16 %v2582, %v2578
    %v2775 = vpack.c.b16 %v2583, %v2579
    %v2776 = vpack.c.b16 %v2584, %v2580
    %v2777 = vpack.c.b16 %v2585, %v2581
    %v2778 = vpack.c.b16 %v2590, %v2586
    %v2779 = vpack.c.b16 %v2591, %v2587
    %v2780 = vpack.c.b16 %v2592, %v2588
    %v2781 = vpack.c.b16 %v2593, %v2589
    %v2782 = vpack.c.b16 %v2598, %v2594
    %v2783 = vpack.c.b16 %v2599, %v2595
    %v2784 = vpack.c.b16 %v2600, %v2596
    %v2785 = vpack.c.b16 %v2601, %v2597
    %v2786 = vpack.c.b16 %v2606, %v2602
    %v2787 = vpack.c.b16 %v2607, %v2603
    %v2788 = vpack.c.b16 %v2608, %v2604
    %v2789 = vpack.c.b16 %v2609, %v2605
    %v2790 = vpack.c.b16 %v2614, %v2610
    %v2791 = vpack.c.b16 %v2615, %v2611
    %v2792 = vpack.c.b16 %v2616, %v2612
    %v2793 = vpack.c.b16 %v2617, %v2613
    %v2794 = vpack.c.b16 %v2622, %v2618
    %v2795 = vpack.c.b16 %v2623, %v2619
    %v2796 = vpack.c.b16 %v2624, %v2620
    %v2797 = vpack.c.b16 %v2625, %v2621
    %v2798 = vpack.c.b16 %v2630, %v2626
    %v2799 = vpack.c.b16 %v2631, %v2627
    %v2800 = vpack.c.b16 %v2632, %v2628
    %v2801 = vpack.c.b16 %v2633, %v2629
    %v2802 = vpack.c.b16 %v2638, %v2634
    %v2803 = vpack.c.b16 %v2639, %v2635
    %v2804 = vpack.c.b16 %v2640, %v2636
    %v2805 = vpack.c.b16 %v2641, %v2637
    %v2806 = vpack.c.b16 %v2646, %v2642
    %v2807 = vpack.c.b16 %v2647, %v2643
    %v2808 = vpack.c.b16 %v2648, %v2644
    %v2809 = vpack.c.b16 %v2649, %v2645
    %v2810 = vpack.c.b16 %v2654, %v2650
    %v2811 = vpack.c.b16 %v2655, %v2651
    %v2812 = vpack.c.b16 %v2656, %v2652
    %v2813 = vpack.c.b16 %v2657, %v2653
    %v2814 = vpack.c.b16 %v2662, %v2658
    %v2815 = vpack.c.b16 %v2663, %v2659
    %v2816 = vpack.c.b16 %v2664, %v2660
    %v2817 = vpack.c.b16 %v2665, %v2661
    %v2818 = vpack.c.b16 %v2670, %v2666
    %v2819 = vpack.c.b16 %v2671, %v2667
    %v2820 = vpack.c.b16 %v2672, %v2668
    %v2821 = vpack.c.b16 %v2673, %v2669
    %v2822 = vpack.c.b16 %v2678, %v2674
    %v2823 = vpack.c.b16 %v2679, %v2675
    %v2824 = vpack.c.b16 %v2680, %v2676
    %v2825 = vpack.c.b16 %v2681, %v2677
    %v2826 = vpack.c.b16 %v2686, %v2682
    %v2827 = vpack.c.b16 %v2687, %v2683
    %v2828 = vpack.c.b16 %v2688, %v2684
    %v2829 = vpack.c.b16 %v2689, %v2685
    %v2830 = vpack.c.b16 %v2694, %v2690
    %v2831 = vpack.c.b16 %v2695, %v2691
    %v2832 = vpack.c.b16 %v2696, %v2692
    %v2833 = vpack.c.b16 %v2697, %v2693
    %v2834 = vpack.c.b16 %v2702, %v2698
    %v2835 = vpack.c.b16 %v2703, %v2699
    %v2836 = vpack.c.b16 %v2704, %v2700
    %v2837 = vpack.c.b16 %v2705, %v2701
    %v2838 = vpack.c.b16 %v2710, %v2706
    %v2839 = vpack.c.b16 %v2711, %v2707
    %v2840 = vpack.c.b16 %v2712, %v2708
    %v2841 = vpack.c.b16 %v2713, %v2709
    %2970 = vmatprep.subr.bf16.mxu0 %v2743
    %2971 = vmatpush1.bf16.msra.mxu0 %v2742
    %2972 = vmatprep.subr.bf16.mxu0 %v2739
    %2973 = vmatpush1.bf16.msra.mxu0 %v2738
    %2974 = vmatprep.subr.bf16.mxu0 %v2735
    %2975 = vmatpush1.bf16.msra.mxu0 %v2734
    %2976 = vmatprep.subr.bf16.mxu0 %v2731
    %2977 = vmatpush1.bf16.msra.mxu0 %v2730
    %2978 = vmatprep.subr.bf16.mxu0 %v2727
    %2979 = vmatpush1.bf16.msra.mxu0 %v2726
    %2980 = vmatprep.subr.bf16.mxu0 %v2723
    %2981 = vmatpush1.bf16.msra.mxu0 %v2722
    %2982 = vmatprep.subr.bf16.mxu0 %v2719
    %2983 = vmatpush1.bf16.msra.mxu0 %v2718
    %2984 = vmatprep.subr.bf16.mxu0 %v2715
    %2985 = vmatpush1.bf16.msra.mxu0 %v2714
    %2986 = vmatprep.subr.bf16.mxu0 %v2775
    %2987 = vmatpush2.bf16.msra.mxu0 %v2774
    %2988 = vmatprep.subr.bf16.mxu0 %v2771
    %2989 = vmatpush2.bf16.msra.mxu0 %v2770
    %2990 = vmatprep.subr.bf16.mxu0 %v2767
    %2991 = vmatpush2.bf16.msra.mxu0 %v2766
    %2992 = vmatprep.subr.bf16.mxu0 %v2763
    %2993 = vmatpush2.bf16.msra.mxu0 %v2762
    %2994 = vmatprep.subr.bf16.mxu0 %v2759
    %2995 = vmatpush2.bf16.msra.mxu0 %v2758
    %2996 = vmatprep.subr.bf16.mxu0 %v2755
    %2997 = vmatpush2.bf16.msra.mxu0 %v2754
    %2998 = vmatprep.subr.bf16.mxu0 %v2751
    %2999 = vmatpush2.bf16.msra.mxu0 %v2750
    %3000 = vmatprep.subr.bf16.mxu0 %v2747
    %3001 = vmatpush2.bf16.msra.mxu0 %v2746
    %3002 = vmatprep.mubr.bf16.mxu0 %v2177
    %3003 = vmatmul.mubr.bf16.gmra.mxu0 %v2176
    %v3004 = vpop.f32.mrf.mxu0
    %v3005 = vadd.f32 %v2313, %v3004
    %v3006 = vpop.f32.mrf.mxu0
    %v3007 = vadd.f32 %v2317, %v3006
    %v3008 = vpop.f32.mrf.mxu0
    %v3009 = vpop.f32.mrf.mxu0
    %3010 = vdwg.mxu0
    %3011 = vmatprep.subr.bf16.mxu0 %v2807
    %3012 = vmatpush1.bf16.msra.mxu0 %v2806
    %3013 = vmatprep.subr.bf16.mxu0 %v2803
    %3014 = vmatpush1.bf16.msra.mxu0 %v2802
    %3015 = vmatprep.subr.bf16.mxu0 %v2799
    %3016 = vmatpush1.bf16.msra.mxu0 %v2798
    %3017 = vmatprep.subr.bf16.mxu0 %v2795
    %3018 = vmatpush1.bf16.msra.mxu0 %v2794
    %3019 = vmatprep.subr.bf16.mxu0 %v2791
    %3020 = vmatpush1.bf16.msra.mxu0 %v2790
    %3021 = vmatprep.subr.bf16.mxu0 %v2787
    %3022 = vmatpush1.bf16.msra.mxu0 %v2786
    %3023 = vmatprep.subr.bf16.mxu0 %v2783
    %3024 = vmatpush1.bf16.msra.mxu0 %v2782
    %3025 = vmatprep.subr.bf16.mxu0 %v2779
    %3026 = vmatpush1.bf16.msra.mxu0 %v2778
    %3027 = vmatprep.subr.bf16.mxu0 %v2839
    %3028 = vmatpush2.bf16.msra.mxu0 %v2838
    %3029 = vmatprep.subr.bf16.mxu0 %v2835
    %3030 = vmatpush2.bf16.msra.mxu0 %v2834
    %3031 = vmatprep.subr.bf16.mxu0 %v2831
    %3032 = vmatpush2.bf16.msra.mxu0 %v2830
    %3033 = vmatprep.subr.bf16.mxu0 %v2827
    %3034 = vmatpush2.bf16.msra.mxu0 %v2826
    %3035 = vmatprep.subr.bf16.mxu0 %v2823
    %3036 = vmatpush2.bf16.msra.mxu0 %v2822
    %3037 = vmatprep.subr.bf16.mxu0 %v2819
    %3038 = vmatpush2.bf16.msra.mxu0 %v2818
    %3039 = vmatprep.subr.bf16.mxu0 %v2815
    %3040 = vmatpush2.bf16.msra.mxu0 %v2814
    %3041 = vmatprep.subr.bf16.mxu0 %v2811
    %3042 = vmatpush2.bf16.msra.mxu0 %v2810
    %3043 = vmatprep.mubr.bf16.mxu0 %v2179
    %3044 = vmatmul.mubr.bf16.gmra.mxu0 %v2178
    %v3045 = vpop.f32.mrf.mxu0
    %v3046 = vadd.f32 %v3005, %v3045
    %v3047 = vpop.f32.mrf.mxu0
    %v3048 = vadd.f32 %v3007, %v3047
    %v3049 = vpop.f32.mrf.mxu0
    %v3050 = vpop.f32.mrf.mxu0
    %3051 = vdwg.mxu0
    %3052 = vmatprep.subr.bf16.mxu0 %v2745
    %3053 = vmatpush1.bf16.msra.mxu0 %v2744
    %3054 = vmatprep.subr.bf16.mxu0 %v2741
    %3055 = vmatpush1.bf16.msra.mxu0 %v2740
    %3056 = vmatprep.subr.bf16.mxu0 %v2737
    %3057 = vmatpush1.bf16.msra.mxu0 %v2736
    %3058 = vmatprep.subr.bf16.mxu0 %v2733
    %3059 = vmatpush1.bf16.msra.mxu0 %v2732
    %3060 = vmatprep.subr.bf16.mxu0 %v2729
    %3061 = vmatpush1.bf16.msra.mxu0 %v2728
    %3062 = vmatprep.subr.bf16.mxu0 %v2725
    %3063 = vmatpush1.bf16.msra.mxu0 %v2724
    %3064 = vmatprep.subr.bf16.mxu0 %v2721
    %3065 = vmatpush1.bf16.msra.mxu0 %v2720
    %3066 = vmatprep.subr.bf16.mxu0 %v2717
    %3067 = vmatpush1.bf16.msra.mxu0 %v2716
    %3068 = vmatprep.subr.bf16.mxu0 %v2777
    %3069 = vmatpush2.bf16.msra.mxu0 %v2776
    %3070 = vmatprep.subr.bf16.mxu0 %v2773
    %3071 = vmatpush2.bf16.msra.mxu0 %v2772
    %3072 = vmatprep.subr.bf16.mxu0 %v2769
    %3073 = vmatpush2.bf16.msra.mxu0 %v2768
    %3074 = vmatprep.subr.bf16.mxu0 %v2765
    %3075 = vmatpush2.bf16.msra.mxu0 %v2764
    %3076 = vmatprep.subr.bf16.mxu0 %v2761
    %3077 = vmatpush2.bf16.msra.mxu0 %v2760
    %3078 = vmatprep.subr.bf16.mxu0 %v2757
    %3079 = vmatpush2.bf16.msra.mxu0 %v2756
    %3080 = vmatprep.subr.bf16.mxu0 %v2753
    %3081 = vmatpush2.bf16.msra.mxu0 %v2752
    %3082 = vmatprep.subr.bf16.mxu0 %v2749
    %3083 = vmatpush2.bf16.msra.mxu0 %v2748
    %3084 = vmatprep.mubr.bf16.mxu0 %v2177
    %3085 = vmatmul.mubr.bf16.gmra.mxu0 %v2176
    %v3086 = vpop.f32.mrf.mxu0
    %v3087 = vadd.f32 %v2321, %v3086
    %v3088 = vpop.f32.mrf.mxu0
    %v3089 = vadd.f32 %v2325, %v3088
    %v3090 = vpop.f32.mrf.mxu0
    %v3091 = vpop.f32.mrf.mxu0
    %3092 = vdwg.mxu0
    %3093 = vmatprep.subr.bf16.mxu0 %v2809
    %3094 = vmatpush1.bf16.msra.mxu0 %v2808
    %3095 = vmatprep.subr.bf16.mxu0 %v2805
    %3096 = vmatpush1.bf16.msra.mxu0 %v2804
    %3097 = vmatprep.subr.bf16.mxu0 %v2801
    %3098 = vmatpush1.bf16.msra.mxu0 %v2800
    %3099 = vmatprep.subr.bf16.mxu0 %v2797
    %3100 = vmatpush1.bf16.msra.mxu0 %v2796
    %3101 = vmatprep.subr.bf16.mxu0 %v2793
    %3102 = vmatpush1.bf16.msra.mxu0 %v2792
    %3103 = vmatprep.subr.bf16.mxu0 %v2789
    %3104 = vmatpush1.bf16.msra.mxu0 %v2788
    %3105 = vmatprep.subr.bf16.mxu0 %v2785
    %3106 = vmatpush1.bf16.msra.mxu0 %v2784
    %3107 = vmatprep.subr.bf16.mxu0 %v2781
    %3108 = vmatpush1.bf16.msra.mxu0 %v2780
    %3109 = vmatprep.subr.bf16.mxu0 %v2841
    %3110 = vmatpush2.bf16.msra.mxu0 %v2840
    %3111 = vmatprep.subr.bf16.mxu0 %v2837
    %3112 = vmatpush2.bf16.msra.mxu0 %v2836
    %3113 = vmatprep.subr.bf16.mxu0 %v2833
    %3114 = vmatpush2.bf16.msra.mxu0 %v2832
    %3115 = vmatprep.subr.bf16.mxu0 %v2829
    %3116 = vmatpush2.bf16.msra.mxu0 %v2828
    %3117 = vmatprep.subr.bf16.mxu0 %v2825
    %3118 = vmatpush2.bf16.msra.mxu0 %v2824
    %3119 = vmatprep.subr.bf16.mxu0 %v2821
    %3120 = vmatpush2.bf16.msra.mxu0 %v2820
    %3121 = vmatprep.subr.bf16.mxu0 %v2817
    %3122 = vmatpush2.bf16.msra.mxu0 %v2816
    %3123 = vmatprep.subr.bf16.mxu0 %v2813
    %3124 = vmatpush2.bf16.msra.mxu0 %v2812
    %3125 = vmatprep.mubr.bf16.mxu0 %v2179
    %3126 = vmatmul.mubr.bf16.gmra.mxu0 %v2178
    %v3127 = vpop.f32.mrf.mxu0
    %v3128 = vadd.f32 %v3087, %v3127
    %v3129 = vpop.f32.mrf.mxu0
    %v3130 = vadd.f32 %v3089, %v3129
    %v3131 = vpop.f32.mrf.mxu0
    %v3132 = vpop.f32.mrf.mxu0
    %3133 = vdwg.mxu0
    %v3134 = vadd.f32 %v3046, %v2168
    %v3135 = vadd.f32 %v3048, %v2169
    %v3136 = vadd.f32 %v3128, %v2170
    %v3137 = vadd.f32 %v3130, %v2171
    %v3138 = vpack.c.bf16 %v3134, %v3134
    %v3139 = vpack.c.bf16 %v3135, %v3135
    %v3140 = vpack.c.bf16 %v3136, %v3136
    %v3141 = vpack.c.bf16 %v3137, %v3137
    %v3142 = vld [vmem:[#allocation9] sm:$0xf]
    %v3143 = vld [vmem:[#allocation9 + $0x4] sm:$0xf]
    %v3144 = vld [vmem:[#allocation9 + $0x8] sm:$0xf]
    %v3145 = vld [vmem:[#allocation9 + $0xc] sm:$0xf]
    %v3146 = vld [vmem:[#allocation9 + $0x10] sm:$0xf]
    %v3147 = vld [vmem:[#allocation9 + $0x14] sm:$0xf]
    %v3148 = vld [vmem:[#allocation9 + $0x18] sm:$0xf]
    %v3149 = vld [vmem:[#allocation9 + $0x1c] sm:$0xf]
    %v3150 = vld [vmem:[#allocation9 + $0x20] sm:$0xf]
    %v3151 = vld [vmem:[#allocation9 + $0x24] sm:$0xf]
    %v3152 = vld [vmem:[#allocation9 + $0x28] sm:$0xf]
    %v3153 = vld [vmem:[#allocation9 + $0x2c] sm:$0xf]
    %v3154 = vld [vmem:[#allocation9 + $0x30] sm:$0xf]
    %v3155 = vld [vmem:[#allocation9 + $0x34] sm:$0xf]
    %v3156 = vld [vmem:[#allocation9 + $0x38] sm:$0xf]
    %v3157 = vld [vmem:[#allocation9 + $0x3c] sm:$0xf]
    %v3158 = vld [vmem:[#allocation9 + $0x40] sm:$0xf]
    %v3159 = vld [vmem:[#allocation9 + $0x44] sm:$0xf]
    %v3160 = vld [vmem:[#allocation9 + $0x48] sm:$0xf]
    %v3161 = vld [vmem:[#allocation9 + $0x4c] sm:$0xf]
    %v3162 = vld [vmem:[#allocation9 + $0x50] sm:$0xf]
    %v3163 = vld [vmem:[#allocation9 + $0x54] sm:$0xf]
    %v3164 = vld [vmem:[#allocation9 + $0x58] sm:$0xf]
    %v3165 = vld [vmem:[#allocation9 + $0x5c] sm:$0xf]
    %v3166 = vld [vmem:[#allocation9 + $0x60] sm:$0xf]
    %v3167 = vld [vmem:[#allocation9 + $0x64] sm:$0xf]
    %v3168 = vld [vmem:[#allocation9 + $0x68] sm:$0xf]
    %v3169 = vld [vmem:[#allocation9 + $0x6c] sm:$0xf]
    %v3170 = vld [vmem:[#allocation9 + $0x70] sm:$0xf]
    %v3171 = vld [vmem:[#allocation9 + $0x74] sm:$0xf]
    %v3172 = vld [vmem:[#allocation9 + $0x78] sm:$0xf]
    %v3173 = vld [vmem:[#allocation9 + $0x7c] sm:$0xf]
    %v3174 = vld [vmem:[#allocation9 + $0x80] sm:$0xf]
    %v3175 = vld [vmem:[#allocation9 + $0x84] sm:$0xf]
    %v3176 = vld [vmem:[#allocation9 + $0x88] sm:$0xf]
    %v3177 = vld [vmem:[#allocation9 + $0x8c] sm:$0xf]
    %v3178 = vld [vmem:[#allocation9 + $0x90] sm:$0xf]
    %v3179 = vld [vmem:[#allocation9 + $0x94] sm:$0xf]
    %v3180 = vld [vmem:[#allocation9 + $0x98] sm:$0xf]
    %v3181 = vld [vmem:[#allocation9 + $0x9c] sm:$0xf]
    %v3182 = vld [vmem:[#allocation9 + $0xa0] sm:$0xf]
    %v3183 = vld [vmem:[#allocation9 + $0xa4] sm:$0xf]
    %v3184 = vld [vmem:[#allocation9 + $0xa8] sm:$0xf]
    %v3185 = vld [vmem:[#allocation9 + $0xac] sm:$0xf]
    %v3186 = vld [vmem:[#allocation9 + $0xb0] sm:$0xf]
    %v3187 = vld [vmem:[#allocation9 + $0xb4] sm:$0xf]
    %v3188 = vld [vmem:[#allocation9 + $0xb8] sm:$0xf]
    %v3189 = vld [vmem:[#allocation9 + $0xbc] sm:$0xf]
    %v3190 = vld [vmem:[#allocation9 + $0xc0] sm:$0xf]
    %v3191 = vld [vmem:[#allocation9 + $0xc4] sm:$0xf]
    %v3192 = vld [vmem:[#allocation9 + $0xc8] sm:$0xf]
    %v3193 = vld [vmem:[#allocation9 + $0xcc] sm:$0xf]
    %v3194 = vld [vmem:[#allocation9 + $0xd0] sm:$0xf]
    %v3195 = vld [vmem:[#allocation9 + $0xd4] sm:$0xf]
    %v3196 = vld [vmem:[#allocation9 + $0xd8] sm:$0xf]
    %v3197 = vld [vmem:[#allocation9 + $0xdc] sm:$0xf]
    %v3198 = vld [vmem:[#allocation9 + $0xe0] sm:$0xf]
    %v3199 = vld [vmem:[#allocation9 + $0xe4] sm:$0xf]
    %v3200 = vld [vmem:[#allocation9 + $0xe8] sm:$0xf]
    %v3201 = vld [vmem:[#allocation9 + $0xec] sm:$0xf]
    %v3202 = vld [vmem:[#allocation9 + $0xf0] sm:$0xf]
    %v3203 = vld [vmem:[#allocation9 + $0xf4] sm:$0xf]
    %v3204 = vld [vmem:[#allocation9 + $0xf8] sm:$0xf]
    %v3205 = vld [vmem:[#allocation9 + $0xfc] sm:$0xf]
    %v3206 = vld [vmem:[%s10] sm:$0x1]
    %v3208 = vlaneseq
    %v3209 = vshrl.u32 %v3208, 7
    %v3210 = vsub.s32 0, %v3209
    %v3211 = vrot.slane %v3206, %v3210
    %v3277 = vunpack.c.l.b16 %v3142
    %v3278 = vunpack.c.l.b16 %v3143
    %v3279 = vunpack.c.l.b16 %v3144
    %v3280 = vunpack.c.l.b16 %v3145
    %v3281 = vunpack.c.l.b16 %v3146
    %v3282 = vunpack.c.l.b16 %v3147
    %v3283 = vunpack.c.l.b16 %v3148
    %v3284 = vunpack.c.l.b16 %v3149
    %v3285 = vunpack.c.l.b16 %v3150
    %v3286 = vunpack.c.l.b16 %v3151
    %v3287 = vunpack.c.l.b16 %v3152
    %v3288 = vunpack.c.l.b16 %v3153
    %v3289 = vunpack.c.l.b16 %v3154
    %v3290 = vunpack.c.l.b16 %v3155
    %v3291 = vunpack.c.l.b16 %v3156
    %v3292 = vunpack.c.l.b16 %v3157
    %v3293 = vunpack.c.l.b16 %v3158
    %v3294 = vunpack.c.l.b16 %v3159
    %v3295 = vunpack.c.l.b16 %v3160
    %v3296 = vunpack.c.l.b16 %v3161
    %v3297 = vunpack.c.l.b16 %v3162
    %v3298 = vunpack.c.l.b16 %v3163
    %v3299 = vunpack.c.l.b16 %v3164
    %v3300 = vunpack.c.l.b16 %v3165
    %v3301 = vunpack.c.l.b16 %v3166
    %v3302 = vunpack.c.l.b16 %v3167
    %v3303 = vunpack.c.l.b16 %v3168
    %v3304 = vunpack.c.l.b16 %v3169
    %v3305 = vunpack.c.l.b16 %v3170
    %v3306 = vunpack.c.l.b16 %v3171
    %v3307 = vunpack.c.l.b16 %v3172
    %v3308 = vunpack.c.l.b16 %v3173
    %v3309 = vunpack.c.l.b16 %v3174
    %v3310 = vunpack.c.l.b16 %v3175
    %v3311 = vunpack.c.l.b16 %v3176
    %v3312 = vunpack.c.l.b16 %v3177
    %v3313 = vunpack.c.l.b16 %v3178
    %v3314 = vunpack.c.l.b16 %v3179
    %v3315 = vunpack.c.l.b16 %v3180
    %v3316 = vunpack.c.l.b16 %v3181
    %v3317 = vunpack.c.l.b16 %v3182
    %v3318 = vunpack.c.l.b16 %v3183
    %v3319 = vunpack.c.l.b16 %v3184
    %v3320 = vunpack.c.l.b16 %v3185
    %v3321 = vunpack.c.l.b16 %v3186
    %v3322 = vunpack.c.l.b16 %v3187
    %v3323 = vunpack.c.l.b16 %v3188
    %v3324 = vunpack.c.l.b16 %v3189
    %v3325 = vunpack.c.l.b16 %v3190
    %v3326 = vunpack.c.l.b16 %v3191
    %v3327 = vunpack.c.l.b16 %v3192
    %v3328 = vunpack.c.l.b16 %v3193
    %v3329 = vunpack.c.l.b16 %v3194
    %v3330 = vunpack.c.l.b16 %v3195
    %v3331 = vunpack.c.l.b16 %v3196
    %v3332 = vunpack.c.l.b16 %v3197
    %v3333 = vunpack.c.l.b16 %v3198
    %v3334 = vunpack.c.l.b16 %v3199
    %v3335 = vunpack.c.l.b16 %v3200
    %v3336 = vunpack.c.l.b16 %v3201
    %v3337 = vunpack.c.l.b16 %v3202
    %v3338 = vunpack.c.l.b16 %v3203
    %v3339 = vunpack.c.l.b16 %v3204
    %v3340 = vunpack.c.l.b16 %v3205
    %v3341 = vpack.c.b16 %v3278, %v3277
    %v3342 = vpack.c.b16 %v3280, %v3279
    %v3343 = vpack.c.b16 %v3282, %v3281
    %v3344 = vpack.c.b16 %v3284, %v3283
    %v3345 = vpack.c.b16 %v3286, %v3285
    %v3346 = vpack.c.b16 %v3288, %v3287
    %v3347 = vpack.c.b16 %v3290, %v3289
    %v3348 = vpack.c.b16 %v3292, %v3291
    %v3349 = vpack.c.b16 %v3294, %v3293
    %v3350 = vpack.c.b16 %v3296, %v3295
    %v3351 = vpack.c.b16 %v3298, %v3297
    %v3352 = vpack.c.b16 %v3300, %v3299
    %v3353 = vpack.c.b16 %v3302, %v3301
    %v3354 = vpack.c.b16 %v3304, %v3303
    %v3355 = vpack.c.b16 %v3306, %v3305
    %v3356 = vpack.c.b16 %v3308, %v3307
    %v3357 = vpack.c.b16 %v3310, %v3309
    %v3358 = vpack.c.b16 %v3312, %v3311
    %v3359 = vpack.c.b16 %v3314, %v3313
    %v3360 = vpack.c.b16 %v3316, %v3315
    %v3361 = vpack.c.b16 %v3318, %v3317
    %v3362 = vpack.c.b16 %v3320, %v3319
    %v3363 = vpack.c.b16 %v3322, %v3321
    %v3364 = vpack.c.b16 %v3324, %v3323
    %v3365 = vpack.c.b16 %v3326, %v3325
    %v3366 = vpack.c.b16 %v3328, %v3327
    %v3367 = vpack.c.b16 %v3330, %v3329
    %v3368 = vpack.c.b16 %v3332, %v3331
    %v3369 = vpack.c.b16 %v3334, %v3333
    %v3370 = vpack.c.b16 %v3336, %v3335
    %v3371 = vpack.c.b16 %v3338, %v3337
    %v3372 = vpack.c.b16 %v3340, %v3339
    %3405 = vmatprep.subr.bf16.mxu0 0
    %3406 = vmatpush1.bf16.msra.mxu0 %v3348
    %3407 = vmatprep.subr.bf16.mxu0 0
    %3408 = vmatpush1.bf16.msra.mxu0 %v3347
    %3409 = vmatprep.subr.bf16.mxu0 0
    %3410 = vmatpush1.bf16.msra.mxu0 %v3346
    %3411 = vmatprep.subr.bf16.mxu0 0
    %3412 = vmatpush1.bf16.msra.mxu0 %v3345
    %3413 = vmatprep.subr.bf16.mxu0 0
    %3414 = vmatpush1.bf16.msra.mxu0 %v3344
    %3415 = vmatprep.subr.bf16.mxu0 0
    %3416 = vmatpush1.bf16.msra.mxu0 %v3343
    %3417 = vmatprep.subr.bf16.mxu0 0
    %3418 = vmatpush1.bf16.msra.mxu0 %v3342
    %3419 = vmatprep.subr.bf16.mxu0 0
    %3420 = vmatpush1.bf16.msra.mxu0 %v3341
    %3421 = vmatprep.subr.bf16.mxu0 0
    %3422 = vmatpush2.bf16.msra.mxu0 %v3356
    %3423 = vmatprep.subr.bf16.mxu0 0
    %3424 = vmatpush2.bf16.msra.mxu0 %v3355
    %3425 = vmatprep.subr.bf16.mxu0 0
    %3426 = vmatpush2.bf16.msra.mxu0 %v3354
    %3427 = vmatprep.subr.bf16.mxu0 0
    %3428 = vmatpush2.bf16.msra.mxu0 %v3353
    %3429 = vmatprep.subr.bf16.mxu0 0
    %3430 = vmatpush2.bf16.msra.mxu0 %v3352
    %3431 = vmatprep.subr.bf16.mxu0 0
    %3432 = vmatpush2.bf16.msra.mxu0 %v3351
    %3433 = vmatprep.subr.bf16.mxu0 0
    %3434 = vmatpush2.bf16.msra.mxu0 %v3350
    %3435 = vmatprep.subr.bf16.mxu0 0
    %3436 = vmatpush2.bf16.msra.mxu0 %v3349
    %3437 = vmatprep.mubr.bf16.mxu0 %v3139
    %3438 = vmatmul.mubr.bf16.gmra.mxu0 %v3138
    %v3439 = vpop.f32.mrf.mxu0
    %v3440 = vadd.f32 %v3211, %v3439
    %v3441 = vpop.f32.mrf.mxu0
    %v3442 = vpop.f32.mrf.mxu0
    %v3443 = vpop.f32.mrf.mxu0
    %3444 = vdwg.mxu0
    %3445 = vmatprep.subr.bf16.mxu0 0
    %3446 = vmatpush1.bf16.msra.mxu0 %v3364
    %3447 = vmatprep.subr.bf16.mxu0 0
    %3448 = vmatpush1.bf16.msra.mxu0 %v3363
    %3449 = vmatprep.subr.bf16.mxu0 0
    %3450 = vmatpush1.bf16.msra.mxu0 %v3362
    %3451 = vmatprep.subr.bf16.mxu0 0
    %3452 = vmatpush1.bf16.msra.mxu0 %v3361
    %3453 = vmatprep.subr.bf16.mxu0 0
    %3454 = vmatpush1.bf16.msra.mxu0 %v3360
    %3455 = vmatprep.subr.bf16.mxu0 0
    %3456 = vmatpush1.bf16.msra.mxu0 %v3359
    %3457 = vmatprep.subr.bf16.mxu0 0
    %3458 = vmatpush1.bf16.msra.mxu0 %v3358
    %3459 = vmatprep.subr.bf16.mxu0 0
    %3460 = vmatpush1.bf16.msra.mxu0 %v3357
    %3461 = vmatprep.subr.bf16.mxu0 0
    %3462 = vmatpush2.bf16.msra.mxu0 %v3372
    %3463 = vmatprep.subr.bf16.mxu0 0
    %3464 = vmatpush2.bf16.msra.mxu0 %v3371
    %3465 = vmatprep.subr.bf16.mxu0 0
    %3466 = vmatpush2.bf16.msra.mxu0 %v3370
    %3467 = vmatprep.subr.bf16.mxu0 0
    %3468 = vmatpush2.bf16.msra.mxu0 %v3369
    %3469 = vmatprep.subr.bf16.mxu0 0
    %3470 = vmatpush2.bf16.msra.mxu0 %v3368
    %3471 = vmatprep.subr.bf16.mxu0 0
    %3472 = vmatpush2.bf16.msra.mxu0 %v3367
    %3473 = vmatprep.subr.bf16.mxu0 0
    %3474 = vmatpush2.bf16.msra.mxu0 %v3366
    %3475 = vmatprep.subr.bf16.mxu0 0
    %3476 = vmatpush2.bf16.msra.mxu0 %v3365
    %3477 = vmatprep.mubr.bf16.mxu0 %v3141
    %3478 = vmatmul.mubr.bf16.gmra.mxu0 %v3140
    %v3479 = vpop.f32.mrf.mxu0
    %v3480 = vadd.f32 %v3440, %v3479
    %v3481 = vpop.f32.mrf.mxu0
    %v3482 = vpop.f32.mrf.mxu0
    %v3483 = vpop.f32.mrf.mxu0
    %3484 = vdwg.mxu0
    %v3485 = vtanh.pop %v3480
    %3486 = vst [vmem:[%s11] sm:$0xff] %v3485
    // Predicated region
    $region66: #{_forward.1} parent=1 // pred_check
      _
    $region67: #{_forward.1} parent=1 // pred_check_branch
      %3488 = sbr.rel (0) target = $region69
    $region68: #{_forward.1} parent=1 // pred_region
      _
    $region69: #{_forward.1} parent=1 // pred_fallthru
      _
    // Predicated region
    $region70: #{_forward.1} parent=1 // pred_check
      _
    $region71: #{_forward.1} parent=1 // pred_check_branch
      %3490 = sbr.rel (0) target = $region73
    $region72: #{_forward.1} parent=1 // pred_region
      _
    $region73: #{_forward.1} parent=1 // pred_fallthru
      _
    %3491 = vsyncpa [#allocation3], 1
    %3492 = vsyncpa [#allocation5], 1
    %3493 = vsyncpa [#allocation8], 1

</llo_original>
